<compile_context>
chip_gen: v5e
topology: v5e:2x2
jax: 0.10.0
libtpu: 0.0.40
codegen_flags: <defaults>
</compile_context>

<pallas_src>
import functools

import jax
import jax.numpy as jnp
from jax.experimental import pallas as pl
from jax.experimental.pallas import tpu as pltpu

BN_EPS = 1e-5


# ----------------------------- small helpers -----------------------------

def _round_up(x, m):
    return (x + m - 1) // m * m


def _pick_tile(dim, cap):
    """Largest standard tile <= cap that divides dim, else full extent."""
    for t in (cap, 1024, 512, 256, 128):
        if t <= cap and dim % t == 0:
            return t
    return dim


@functools.lru_cache(maxsize=1)
def _vmem_limit():
    cap = 128 * 1024 * 1024
    try:
        cap = int(pltpu.get_tpu_info().vmem_capacity_bytes)
    except Exception:
        pass
    if cap < 64 * 1024 * 1024:
        cap = 64 * 1024 * 1024  # v7x physical VMEM
    # Leave half of physical VMEM as headroom; never ask for more than 64 MiB.
    return int(min(cap // 2, 64 * 1024 * 1024))


def _mm_tile_caps():
    # Bigger tiles where VMEM allows (v5e/v6e: 128 MiB); smaller on v7x.
    if _vmem_limit() >= 48 * 1024 * 1024:
        return 512, 1024, 512   # tm, tk, bn
    return 256, 512, 512


# ----------------------------- Pallas kernels -----------------------------

def _mm_kernel(*refs, relu, has_res):
    """(tm,tk)@(tk,bn) accumulated over the K grid axis into an f32 scratch,
    then per-channel scale/bias (+optional residual) + optional ReLU."""
    if has_res:
        a_ref, w_ref, s_ref, b_ref, r_ref, o_ref, acc_ref = refs
    else:
        a_ref, w_ref, s_ref, b_ref, o_ref, acc_ref = refs
        r_ref = None
    k = pl.program_id(2)

    @pl.when(k == 0)
    def _():
        acc_ref[...] = jnp.zeros_like(acc_ref)

    acc_ref[...] += jnp.dot(a_ref[...], w_ref[...],
                            preferred_element_type=jnp.float32)

    @pl.when(k == pl.num_programs(2) - 1)
    def _():
        out = acc_ref[...] * s_ref[...] + b_ref[...]
        if r_ref is not None:
            out = out + r_ref[...].astype(jnp.float32)
        if relu:
            out = jnp.maximum(out, 0.0)
        o_ref[...] = out.astype(o_ref.dtype)


def _conv_tap_kernel(x_ref, w_ref, s_ref, b_ref, o_ref, *,
                     kh, kw, stride, wo, hph, relu):
    """Direct conv for one (image, cout-tile, output-row): accumulate kh*kw
    shifted (wo, Cin)@(Cin, bn) matmuls read straight from the phase-decomposed
    padded input resident in VMEM (no im2col tensor in HBM)."""
    hi = pl.program_id(2)
    s = stride
    acc = None
    for i in range(kh):
        for j in range(kw):
            ph = (i % s) * s + (j % s)      # phase index (static)
            di, dj = i // s, j // s          # offsets inside the phase (static)
            row = ph * hph + di + hi         # dynamic H index (major axis)
            a = x_ref[0, pl.ds(row, 1), pl.ds(dj, wo), :]   # (1, wo, Cin)
            a = a[0]                                         # (wo, Cin)
            tap = jnp.dot(a, w_ref[i * kw + j],
                          preferred_element_type=jnp.float32)  # (wo, bn)
            acc = tap if acc is None else acc + tap
    out = acc * s_ref[...] + b_ref[...]
    if relu:
        out = jnp.maximum(out, 0.0)
    o_ref[0, 0] = out.astype(o_ref.dtype)


def _maxpool_tap_kernel(x_ref, o_ref, *, k, stride, wo, hph):
    hi = pl.program_id(1)
    s = stride
    m = None
    for i in range(k):
        for j in range(k):
            ph = (i % s) * s + (j % s)
            di, dj = i // s, j // s
            row = ph * hph + di + hi
            v = x_ref[0, pl.ds(row, 1), pl.ds(dj, wo), :][0]
            m = v if m is None else jnp.maximum(m, v)
    o_ref[0, 0] = m


def _avgpool_kernel(x_ref, o_ref):
    o_ref[...] = jnp.mean(x_ref[...].astype(jnp.float32), axis=1, keepdims=True)


# ----------------------------- kernel wrappers -----------------------------

def fused_matmul(a, w, scale, bias, residual=None, *, relu=False,
                 out_dtype=jnp.bfloat16):
    """out[M,N] = act((a @ w) * scale + bias [+ residual]) tiled over M/N/K."""
    M, K = a.shape
    K2, N = w.shape
    assert K == K2
    tm_cap, tk_cap, bn_cap = _mm_tile_caps()
    if M <= tm_cap:
        tm, Mp = M, M                  # full-extent M block
    else:
        tm = tm_cap
        Mp = _round_up(M, tm)
    tk = _pick_tile(K, tk_cap)
    bn = _pick_tile(N, bn_cap)

    a = a.astype(jnp.bfloat16)
    w = w.astype(jnp.bfloat16)
    if Mp != M:
        a = jnp.pad(a, ((0, Mp - M), (0, 0)))
    s2 = scale.reshape(1, N).astype(jnp.float32)
    b2 = bias.reshape(1, N).astype(jnp.float32)

    operands = [a, w, s2, b2]
    in_specs = [
        pl.BlockSpec((tm, tk), lambda i, j, k: (i, k)),
        pl.BlockSpec((tk, bn), lambda i, j, k: (k, j)),
        pl.BlockSpec((1, bn), lambda i, j, k: (0, j)),
        pl.BlockSpec((1, bn), lambda i, j, k: (0, j)),
    ]
    has_res = residual is not None
    if has_res:
        r = residual.astype(jnp.bfloat16)
        if Mp != M:
            r = jnp.pad(r, ((0, Mp - M), (0, 0)))
        operands.append(r)
        in_specs.append(pl.BlockSpec((tm, bn), lambda i, j, k: (i, j)))

    grid = (Mp // tm, N // bn, K // tk)
    out_bytes = Mp * N * jnp.dtype(out_dtype).itemsize
    out = pl.pallas_call(
        functools.partial(_mm_kernel, relu=relu, has_res=has_res),
        out_shape=jax.ShapeDtypeStruct((Mp, N), out_dtype),
        grid_spec=pltpu.PrefetchScalarGridSpec(
            num_scalar_prefetch=0,
            grid=grid,
            in_specs=in_specs,
            out_specs=pl.BlockSpec((tm, bn), lambda i, j, k: (i, j)),
            scratch_shapes=[pltpu.VMEM((tm, bn), jnp.float32)],
        ),
        compiler_params=pltpu.CompilerParams(
            dimension_semantics=("parallel", "parallel", "arbitrary"),
            vmem_limit_bytes=_vmem_limit(),
        ),
        cost_estimate=pl.CostEstimate(
            flops=int(2 * Mp * N * K),
            transcendentals=0,
            bytes_accessed=int(a.size * 2 + w.size * 2 + out_bytes),
        ),
    )(*operands)
    if Mp != M:
        out = out[:M]
    return out


def _phase_decompose(xp, stride, pad_value):
    """Pad H/W to a multiple of stride and concatenate the stride*stride phase
    sub-grids along H: (N, s*s*Hph, Wph, C). Every conv/pool tap then becomes a
    unit-stride shifted window."""
    N, Hp, Wp, C = xp.shape
    s = stride
    if s == 1:
        return xp, Hp, Wp, 1
    Hp2, Wp2 = _round_up(Hp, s), _round_up(Wp, s)
    if Hp2 != Hp or Wp2 != Wp:
        xp = jnp.pad(xp, ((0, 0), (0, Hp2 - Hp), (0, Wp2 - Wp), (0, 0)),
                     constant_values=pad_value)
    Hph, Wph = Hp2 // s, Wp2 // s
    phases = [xp[:, pi::s, pj::s, :] for pi in range(s) for pj in range(s)]
    return jnp.concatenate(phases, axis=1), Hph, Wph, s * s


def conv_kxk_bn_act(x, w, scale, bias, *, stride, pad, relu):
    """kxk Conv2d (no bias) + folded BN + optional ReLU via the direct
    tap-accumulation kernel. x: NHWC, w: HWIO."""
    N, H, W, C = x.shape
    kh, kw, cin, cout = w.shape
    assert cin == C
    s = stride
    Ho = (H + 2 * pad - kh) // s + 1
    Wo = (W + 2 * pad - kw) // s + 1

    x = x.astype(jnp.bfloat16)
    cin_p = _round_up(cin, 8)
    if cin_p != cin:   # stem: pad 3 channels -> 8 (zero contribution)
        x = jnp.pad(x, ((0, 0), (0, 0), (0, 0), (0, cin_p - cin)))
        w = jnp.pad(w, ((0, 0), (0, 0), (0, cin_p - cin), (0, 0)))
    xp = jnp.pad(x, ((0, 0), (pad, pad), (pad, pad), (0, 0)))
    xph, Hph, Wph, nph = _phase_decompose(xp, s, 0.0)
    Htot = nph * Hph

    wt = w.reshape(kh * kw, cin_p, cout).astype(jnp.bfloat16)
    bn = _pick_tile(cout, 256)
    nct = cout // bn
    grid = (N, nct, Ho)

    out = pl.pallas_call(
        functools.partial(_conv_tap_kernel, kh=kh, kw=kw, stride=s,
                          wo=Wo, hph=Hph, relu=relu),
        out_shape=jax.ShapeDtypeStruct((N, Ho, Wo, cout), jnp.bfloat16),
        grid_spec=pltpu.PrefetchScalarGridSpec(
            num_scalar_prefetch=0,
            grid=grid,
            in_specs=[
                pl.BlockSpec((1, Htot, Wph, cin_p), lambda n, ci, hi: (n, 0, 0, 0)),
                pl.BlockSpec((kh * kw, cin_p, bn), lambda n, ci, hi: (0, 0, ci)),
                pl.BlockSpec((1, bn), lambda n, ci, hi: (0, ci)),
                pl.BlockSpec((1, bn), lambda n, ci, hi: (0, ci)),
            ],
            out_specs=pl.BlockSpec((1, 1, Wo, bn), lambda n, ci, hi: (n, hi, 0, ci)),
        ),
        compiler_params=pltpu.CompilerParams(
            dimension_semantics=("parallel", "parallel", "parallel"),
            vmem_limit_bytes=_vmem_limit(),
        ),
        cost_estimate=pl.CostEstimate(
            flops=int(2 * N * Ho * Wo * kh * kw * cin_p * cout),
            transcendentals=0,
            bytes_accessed=int(xph.size * 2 + wt.size * 2 + N * Ho * Wo * cout * 2),
        ),
    )(xph, wt, scale.reshape(1, cout).astype(jnp.float32),
      bias.reshape(1, cout).astype(jnp.float32))
    return out


def conv1x1_bn_act(x, w, scale, bias, *, stride=1, relu=False, residual=None,
                   out_dtype=jnp.bfloat16):
    """1x1 Conv2d + folded BN + optional ReLU (+ optional fused residual add)."""
    if stride > 1:
        x = x[:, ::stride, ::stride, :]
    N, H, W, C = x.shape
    cout = w.shape[-1]
    a = x.reshape(N * H * W, C)
    wm = w.reshape(C, cout)
    r = residual.reshape(N * H * W, cout) if residual is not None else None
    out = fused_matmul(a, wm, scale, bias, residual=r, relu=relu,
                       out_dtype=out_dtype)
    return out.reshape(N, H, W, cout)


def maxpool2d(x, *, k=3, stride=2, pad=1):
    N, H, W, C = x.shape
    s = stride
    Ho = (H + 2 * pad - k) // s + 1
    Wo = (W + 2 * pad - k) // s + 1
    neg = jnp.finfo(x.dtype).min
    xp = jnp.pad(x, ((0, 0), (pad, pad), (pad, pad), (0, 0)), constant_values=neg)
    xph, Hph, Wph, nph = _phase_decompose(xp, s, neg)
    Htot = nph * Hph
    return pl.pallas_call(
        functools.partial(_maxpool_tap_kernel, k=k, stride=s, wo=Wo, hph=Hph),
        out_shape=jax.ShapeDtypeStruct((N, Ho, Wo, C), x.dtype),
        grid_spec=pltpu.PrefetchScalarGridSpec(
            num_scalar_prefetch=0,
            grid=(N, Ho),
            in_specs=[pl.BlockSpec((1, Htot, Wph, C), lambda n, hi: (n, 0, 0, 0))],
            out_specs=pl.BlockSpec((1, 1, Wo, C), lambda n, hi: (n, hi, 0, 0)),
        ),
        compiler_params=pltpu.CompilerParams(
            dimension_semantics=("parallel", "parallel"),
            vmem_limit_bytes=_vmem_limit(),
        ),
    )(xph)


def global_avgpool(x):
    N, H, W, C = x.shape
    x3 = x.reshape(N, H * W, C)
    out = pl.pallas_call(
        _avgpool_kernel,
        out_shape=jax.ShapeDtypeStruct((N, 1, C), jnp.float32),
        grid_spec=pltpu.PrefetchScalarGridSpec(
            num_scalar_prefetch=0,
            grid=(N,),
            in_specs=[pl.BlockSpec((1, H * W, C), lambda n: (n, 0, 0))],
            out_specs=pl.BlockSpec((1, 1, C), lambda n: (n, 0, 0)),
        ),
        compiler_params=pltpu.CompilerParams(
            dimension_semantics=("parallel",),
            vmem_limit_bytes=_vmem_limit(),
        ),
    )(x3)
    return out.reshape(N, C)


# ----------------------------- parameters -----------------------------

def _conv_w(key, kh, kw, cin, cout):
    std = (2.0 / (kh * kw * cin)) ** 0.5
    return jax.random.normal(key, (kh, kw, cin, cout), jnp.float32) * std


def _bn_params(c):
    # Fresh eval-mode BatchNorm2d: gamma=1, beta=0, running_mean=0, running_var=1
    # folded into per-channel (scale, bias).
    scale = jnp.full((c,), 1.0 / jnp.sqrt(1.0 + BN_EPS), jnp.float32)
    bias = jnp.zeros((c,), jnp.float32)
    return scale, bias


def make_bottleneck(key, cin, width, stride):
    cout = width * 4
    k1, k2, k3, k4 = jax.random.split(key, 4)
    p = {
        "w1": _conv_w(k1, 1, 1, cin, width), "bn1": _bn_params(width),
        "w2": _conv_w(k2, 3, 3, width, width), "bn2": _bn_params(width),
        "w3": _conv_w(k3, 1, 1, width, cout), "bn3": _bn_params(cout),
        "stride": stride,
    }
    if stride != 1 or cin != cout:
        p["wd"] = _conv_w(k4, 1, 1, cin, cout)
        p["bnd"] = _bn_params(cout)
    return p, cout


def init_resnet_wrapper_params(key, n_cls, blocks=(1, 1, 1, 1)):
    keys = jax.random.split(key, 16)
    params = {}
    params["conv1_w"] = _conv_w(keys[0], 7, 7, 3, 64)
    params["bn1"] = _bn_params(64)
    cin = 64
    widths = (64, 128, 256, 512)
    strides = (1, 2, 2, 2)
    layers = []
    kidx = 1
    for width, stride, nb in zip(widths, strides, blocks):
        blk_list = []
        for b in range(nb):
            p, cin = make_bottleneck(keys[kidx], cin, width, stride if b == 0 else 1)
            kidx += 1
            blk_list.append(p)
        layers.append(blk_list)
    params["layers"] = layers
    params["squeeze_w"] = _conv_w(keys[kidx], 1, 1, 2048, 512); kidx += 1
    params["fc_w"] = jax.random.normal(keys[kidx], (512, n_cls), jnp.float32) * (1.0 / 512 ** 0.5)
    params["fc_b"] = jnp.zeros((n_cls,), jnp.float32)
    return params


# ----------------------------- forward -----------------------------

def bottleneck_forward(x, p):
    stride = p["stride"]
    if "wd" in p:
        identity = conv1x1_bn_act(x, p["wd"], *p["bnd"], stride=stride, relu=False)
    else:
        identity = x
    out = conv1x1_bn_act(x, p["w1"], *p["bn1"], relu=True)
    out = conv_kxk_bn_act(out, p["w2"], *p["bn2"], stride=stride, pad=1, relu=True)
    # residual add + final ReLU fused into the 3rd conv's matmul epilogue
    out = conv1x1_bn_act(out, p["w3"], *p["bn3"], relu=True, residual=identity)
    return out


def resnet_wrapper_forward(params, x_nchw):
    x = jnp.transpose(x_nchw, (0, 2, 3, 1)).astype(jnp.float32)  # NCHW -> NHWC
    # stem: conv1 7x7/2 + bn1 + relu + maxpool 3x3/2
    x = conv_kxk_bn_act(x, params["conv1_w"], *params["bn1"], stride=2, pad=3, relu=True)
    x = maxpool2d(x, k=3, stride=2, pad=1)
    # layer1..layer4
    for blk_list in params["layers"]:
        for p in blk_list:
            x = bottleneck_forward(x, p)
    # squeeze: Conv2d(2048, 512, 1x1, bias=False) — no BN, no ReLU
    ones = jnp.ones((512,), jnp.float32)
    zeros = jnp.zeros((512,), jnp.float32)
    x = conv1x1_bn_act(x, params["squeeze_w"], ones, zeros, relu=False)
    # avgpool -> feat_vec (B, 512, 1, 1); fc -> cls_vec (B, n_cls)
    feat = global_avgpool(x)  # (B, 512) f32
    n_cls = params["fc_w"].shape[1]
    ncp = _round_up(n_cls, 128)  # lane-dense fc output, sliced after
    fc_w = jnp.pad(params["fc_w"], ((0, 0), (0, ncp - n_cls)))
    fc_b = jnp.pad(params["fc_b"], ((0, ncp - n_cls),))
    cls = fused_matmul(feat, fc_w, jnp.ones((ncp,), jnp.float32), fc_b,
                       relu=False, out_dtype=jnp.float32)
    cls_vec = cls[:, :n_cls]
    feat_vec = feat.reshape(feat.shape[0], 512, 1, 1)  # matches torch NCHW avgpool output
    return feat_vec, cls_vec


# TODO(synk): training-mode BatchNorm (batch statistics / running-stat update)
# is not implemented; eval-mode running stats are folded into the matmul
# kernels' per-channel scale/bias.

if __name__ == "__main__":
    key = jax.random.PRNGKey(0)
    kp, kx = jax.random.split(key)
    n_cls = 10
    params = init_resnet_wrapper_params(kp, n_cls=n_cls)
    x = jax.random.normal(kx, (2, 3, 16, 16), jnp.float32)  # NCHW, like PyTorch

    feat_vec, cls_vec = resnet_wrapper_forward(params, x)
    jax.block_until_ready((feat_vec, cls_vec))

    assert feat_vec.shape == (2, 512, 1, 1), feat_vec.shape
    assert cls_vec.shape == (2, n_cls), cls_vec.shape
    assert bool(jnp.all(jnp.isfinite(cls_vec))), "non-finite logits"
    print("KERNEL_OK")
</pallas_src>

<mosaic_0001>
module attributes {stable_mosaic.version = 11 : i64} {
  func.func @_conv_tap_kernel(%arg0: i32, %arg1: i32, %arg2: i32, %arg3: memref<1x44x11x8xbf16, #tpu.memory_space<vmem>>, %arg4: memref<49x8x64xbf16, #tpu.memory_space<vmem>>, %arg5: memref<1x64xf32, #tpu.memory_space<vmem>>, %arg6: memref<1x64xf32, #tpu.memory_space<vmem>>, %arg7: memref<1x1x8x64xbf16, #tpu.memory_space<vmem>>) attributes {dimension_semantics = [#tpu.dimension_semantics<parallel>, #tpu.dimension_semantics<parallel>, #tpu.dimension_semantics<parallel>], iteration_bounds = array<i64: 2, 1, 8>, scalar_prefetch = 0 : i64, scratch_operands = 0 : i64, tpu.core_type = #tpu.core_type<tc>, window_params = [{transform_indices = @transform_0, window_bounds = array<i64: 1, 44, 11, 8>}, {transform_indices = @transform_1, window_bounds = array<i64: 49, 8, 64>}, {transform_indices = @transform_2, window_bounds = array<i64: 1, 64>}, {transform_indices = @transform_3, window_bounds = array<i64: 1, 64>}, {transform_indices = @transform_4, window_bounds = array<i64: 1, 1, 8, 64>}]} {
    %c0_i32 = arith.constant 0 : i32
    %0 = arith.addi %c0_i32, %arg2 : i32
    %c0 = arith.constant 0 : index
    %1 = arith.index_cast %0 : i32 to index
    %c0_0 = arith.constant 0 : index
    %c0_1 = arith.constant 0 : index
    %2 = vector.load %arg3[%c0, %1, %c0_0, %c0_1] : memref<1x44x11x8xbf16, #tpu.memory_space<vmem>>, vector<1x1x8x8xbf16>
    %3 = vector.shape_cast %2 : vector<1x1x8x8xbf16> to vector<1x8x8xbf16>
    %4 = vector.shape_cast %3 : vector<1x8x8xbf16> to vector<8x8xbf16>
    %c0_2 = arith.constant 0 : index
    %c0_3 = arith.constant 0 : index
    %c0_4 = arith.constant 0 : index
    %5 = vector.load %arg4[%c0_2, %c0_3, %c0_4] : memref<49x8x64xbf16, #tpu.memory_space<vmem>>, vector<1x8x64xbf16>
    %6 = vector.shape_cast %5 : vector<1x8x64xbf16> to vector<8x64xbf16>
    %cst = arith.constant dense<0.000000e+00> : vector<8x64xf32>
    %7 = tpu.matmul %4, %6, %cst {dimension_numbers = #tpu.dot_dimension_numbers<[1], [0], [0], [1], [0, 0, 1, 1], [], []>} : vector<8x8xbf16>, vector<8x64xbf16>, vector<8x64xf32> -> vector<8x64xf32>
    %c11_i32 = arith.constant 11 : i32
    %8 = arith.addi %c11_i32, %arg2 : i32
    %c0_5 = arith.constant 0 : index
    %9 = arith.index_cast %8 : i32 to index
    %c0_6 = arith.constant 0 : index
    %c0_7 = arith.constant 0 : index
    %10 = vector.load %arg3[%c0_5, %9, %c0_6, %c0_7] : memref<1x44x11x8xbf16, #tpu.memory_space<vmem>>, vector<1x1x8x8xbf16>
    %11 = vector.shape_cast %10 : vector<1x1x8x8xbf16> to vector<1x8x8xbf16>
    %12 = vector.shape_cast %11 : vector<1x8x8xbf16> to vector<8x8xbf16>
    %c1 = arith.constant 1 : index
    %c0_8 = arith.constant 0 : index
    %c0_9 = arith.constant 0 : index
    %13 = vector.load %arg4[%c1, %c0_8, %c0_9] : memref<49x8x64xbf16, #tpu.memory_space<vmem>>, vector<1x8x64xbf16>
    %14 = vector.shape_cast %13 : vector<1x8x64xbf16> to vector<8x64xbf16>
    %cst_10 = arith.constant dense<0.000000e+00> : vector<8x64xf32>
    %15 = tpu.matmul %12, %14, %cst_10 {dimension_numbers = #tpu.dot_dimension_numbers<[1], [0], [0], [1], [0, 0, 1, 1], [], []>} : vector<8x8xbf16>, vector<8x64xbf16>, vector<8x64xf32> -> vector<8x64xf32>
    %16 = arith.addf %7, %15 : vector<8x64xf32>
    %c0_i32_11 = arith.constant 0 : i32
    %17 = arith.addi %c0_i32_11, %arg2 : i32
    %c0_12 = arith.constant 0 : index
    %18 = arith.index_cast %17 : i32 to index
    %c1_13 = arith.constant 1 : index
    %c0_14 = arith.constant 0 : index
    %19 = vector.load %arg3[%c0_12, %18, %c1_13, %c0_14] : memref<1x44x11x8xbf16, #tpu.memory_space<vmem>>, vector<1x1x8x8xbf16>
    %20 = vector.shape_cast %19 : vector<1x1x8x8xbf16> to vector<1x8x8xbf16>
    %21 = vector.shape_cast %20 : vector<1x8x8xbf16> to vector<8x8xbf16>
    %c2 = arith.constant 2 : index
    %c0_15 = arith.constant 0 : index
    %c0_16 = arith.constant 0 : index
    %22 = vector.load %arg4[%c2, %c0_15, %c0_16] : memref<49x8x64xbf16, #tpu.memory_space<vmem>>, vector<1x8x64xbf16>
    %23 = vector.shape_cast %22 : vector<1x8x64xbf16> to vector<8x64xbf16>
    %cst_17 = arith.constant dense<0.000000e+00> : vector<8x64xf32>
    %24 = tpu.matmul %21, %23, %cst_17 {dimension_numbers = #tpu.dot_dimension_numbers<[1], [0], [0], [1], [0, 0, 1, 1], [], []>} : vector<8x8xbf16>, vector<8x64xbf16>, vector<8x64xf32> -> vector<8x64xf32>
    %25 = arith.addf %16, %24 : vector<8x64xf32>
    %c11_i32_18 = arith.constant 11 : i32
    %26 = arith.addi %c11_i32_18, %arg2 : i32
    %c0_19 = arith.constant 0 : index
    %27 = arith.index_cast %26 : i32 to index
    %c1_20 = arith.constant 1 : index
    %c0_21 = arith.constant 0 : index
    %28 = vector.load %arg3[%c0_19, %27, %c1_20, %c0_21] : memref<1x44x11x8xbf16, #tpu.memory_space<vmem>>, vector<1x1x8x8xbf16>
    %29 = vector.shape_cast %28 : vector<1x1x8x8xbf16> to vector<1x8x8xbf16>
    %30 = vector.shape_cast %29 : vector<1x8x8xbf16> to vector<8x8xbf16>
    %c3 = arith.constant 3 : index
    %c0_22 = arith.constant 0 : index
    %c0_23 = arith.constant 0 : index
    %31 = vector.load %arg4[%c3, %c0_22, %c0_23] : memref<49x8x64xbf16, #tpu.memory_space<vmem>>, vector<1x8x64xbf16>
    %32 = vector.shape_cast %31 : vector<1x8x64xbf16> to vector<8x64xbf16>
    %cst_24 = arith.constant dense<0.000000e+00> : vector<8x64xf32>
    %33 = tpu.matmul %30, %32, %cst_24 {dimension_numbers = #tpu.dot_dimension_numbers<[1], [0], [0], [1], [0, 0, 1, 1], [], []>} : vector<8x8xbf16>, vector<8x64xbf16>, vector<8x64xf32> -> vector<8x64xf32>
    %34 = arith.addf %25, %33 : vector<8x64xf32>
    %c0_i32_25 = arith.constant 0 : i32
    %35 = arith.addi %c0_i32_25, %arg2 : i32
    %c0_26 = arith.constant 0 : index
    %36 = arith.index_cast %35 : i32 to index
    %c2_27 = arith.constant 2 : index
    %c0_28 = arith.constant 0 : index
    %37 = vector.load %arg3[%c0_26, %36, %c2_27, %c0_28] : memref<1x44x11x8xbf16, #tpu.memory_space<vmem>>, vector<1x1x8x8xbf16>
    %38 = vector.shape_cast %37 : vector<1x1x8x8xbf16> to vector<1x8x8xbf16>
    %39 = vector.shape_cast %38 : vector<1x8x8xbf16> to vector<8x8xbf16>
    %c4 = arith.constant 4 : index
    %c0_29 = arith.constant 0 : index
    %c0_30 = arith.constant 0 : index
    %40 = vector.load %arg4[%c4, %c0_29, %c0_30] : memref<49x8x64xbf16, #tpu.memory_space<vmem>>, vector<1x8x64xbf16>
    %41 = vector.shape_cast %40 : vector<1x8x64xbf16> to vector<8x64xbf16>
    %cst_31 = arith.constant dense<0.000000e+00> : vector<8x64xf32>
    %42 = tpu.matmul %39, %41, %cst_31 {dimension_numbers = #tpu.dot_dimension_numbers<[1], [0], [0], [1], [0, 0, 1, 1], [], []>} : vector<8x8xbf16>, vector<8x64xbf16>, vector<8x64xf32> -> vector<8x64xf32>
    %43 = arith.addf %34, %42 : vector<8x64xf32>
    %c11_i32_32 = arith.constant 11 : i32
    %44 = arith.addi %c11_i32_32, %arg2 : i32
    %c0_33 = arith.constant 0 : index
    %45 = arith.index_cast %44 : i32 to index
    %c2_34 = arith.constant 2 : index
    %c0_35 = arith.constant 0 : index
    %46 = vector.load %arg3[%c0_33, %45, %c2_34, %c0_35] : memref<1x44x11x8xbf16, #tpu.memory_space<vmem>>, vector<1x1x8x8xbf16>
    %47 = vector.shape_cast %46 : vector<1x1x8x8xbf16> to vector<1x8x8xbf16>
    %48 = vector.shape_cast %47 : vector<1x8x8xbf16> to vector<8x8xbf16>
    %c5 = arith.constant 5 : index
    %c0_36 = arith.constant 0 : index
    %c0_37 = arith.constant 0 : index
    %49 = vector.load %arg4[%c5, %c0_36, %c0_37] : memref<49x8x64xbf16, #tpu.memory_space<vmem>>, vector<1x8x64xbf16>
    %50 = vector.shape_cast %49 : vector<1x8x64xbf16> to vector<8x64xbf16>
    %cst_38 = arith.constant dense<0.000000e+00> : vector<8x64xf32>
    %51 = tpu.matmul %48, %50, %cst_38 {dimension_numbers = #tpu.dot_dimension_numbers<[1], [0], [0], [1], [0, 0, 1, 1], [], []>} : vector<8x8xbf16>, vector<8x64xbf16>, vector<8x64xf32> -> vector<8x64xf32>
    %52 = arith.addf %43, %51 : vector<8x64xf32>
    %c0_i32_39 = arith.constant 0 : i32
    %53 = arith.addi %c0_i32_39, %arg2 : i32
    %c0_40 = arith.constant 0 : index
    %54 = arith.index_cast %53 : i32 to index
    %c3_41 = arith.constant 3 : index
    %c0_42 = arith.constant 0 : index
    %55 = vector.load %arg3[%c0_40, %54, %c3_41, %c0_42] : memref<1x44x11x8xbf16, #tpu.memory_space<vmem>>, vector<1x1x8x8xbf16>
    %56 = vector.shape_cast %55 : vector<1x1x8x8xbf16> to vector<1x8x8xbf16>
    %57 = vector.shape_cast %56 : vector<1x8x8xbf16> to vector<8x8xbf16>
    %c6 = arith.constant 6 : index
    %c0_43 = arith.constant 0 : index
    %c0_44 = arith.constant 0 : index
    %58 = vector.load %arg4[%c6, %c0_43, %c0_44] : memref<49x8x64xbf16, #tpu.memory_space<vmem>>, vector<1x8x64xbf16>
    %59 = vector.shape_cast %58 : vector<1x8x64xbf16> to vector<8x64xbf16>
    %cst_45 = arith.constant dense<0.000000e+00> : vector<8x64xf32>
    %60 = tpu.matmul %57, %59, %cst_45 {dimension_numbers = #tpu.dot_dimension_numbers<[1], [0], [0], [1], [0, 0, 1, 1], [], []>} : vector<8x8xbf16>, vector<8x64xbf16>, vector<8x64xf32> -> vector<8x64xf32>
    %61 = arith.addf %52, %60 : vector<8x64xf32>
    %c22_i32 = arith.constant 22 : i32
    %62 = arith.addi %c22_i32, %arg2 : i32
    %c0_46 = arith.constant 0 : index
    %63 = arith.index_cast %62 : i32 to index
    %c0_47 = arith.constant 0 : index
    %c0_48 = arith.constant 0 : index
    %64 = vector.load %arg3[%c0_46, %63, %c0_47, %c0_48] : memref<1x44x11x8xbf16, #tpu.memory_space<vmem>>, vector<1x1x8x8xbf16>
    %65 = vector.shape_cast %64 : vector<1x1x8x8xbf16> to vector<1x8x8xbf16>
    %66 = vector.shape_cast %65 : vector<1x8x8xbf16> to vector<8x8xbf16>
    %c7 = arith.constant 7 : index
    %c0_49 = arith.constant 0 : index
    %c0_50 = arith.constant 0 : index
    %67 = vector.load %arg4[%c7, %c0_49, %c0_50] : memref<49x8x64xbf16, #tpu.memory_space<vmem>>, vector<1x8x64xbf16>
    %68 = vector.shape_cast %67 : vector<1x8x64xbf16> to vector<8x64xbf16>
    %cst_51 = arith.constant dense<0.000000e+00> : vector<8x64xf32>
    %69 = tpu.matmul %66, %68, %cst_51 {dimension_numbers = #tpu.dot_dimension_numbers<[1], [0], [0], [1], [0, 0, 1, 1], [], []>} : vector<8x8xbf16>, vector<8x64xbf16>, vector<8x64xf32> -> vector<8x64xf32>
    %70 = arith.addf %61, %69 : vector<8x64xf32>
    %c33_i32 = arith.constant 33 : i32
    %71 = arith.addi %c33_i32, %arg2 : i32
    %c0_52 = arith.constant 0 : index
    %72 = arith.index_cast %71 : i32 to index
    %c0_53 = arith.constant 0 : index
    %c0_54 = arith.constant 0 : index
    %73 = vector.load %arg3[%c0_52, %72, %c0_53, %c0_54] : memref<1x44x11x8xbf16, #tpu.memory_space<vmem>>, vector<1x1x8x8xbf16>
    %74 = vector.shape_cast %73 : vector<1x1x8x8xbf16> to vector<1x8x8xbf16>
    %75 = vector.shape_cast %74 : vector<1x8x8xbf16> to vector<8x8xbf16>
    %c8 = arith.constant 8 : index
    %c0_55 = arith.constant 0 : index
    %c0_56 = arith.constant 0 : index
    %76 = vector.load %arg4[%c8, %c0_55, %c0_56] : memref<49x8x64xbf16, #tpu.memory_space<vmem>>, vector<1x8x64xbf16>
    %77 = vector.shape_cast %76 : vector<1x8x64xbf16> to vector<8x64xbf16>
    %cst_57 = arith.constant dense<0.000000e+00> : vector<8x64xf32>
    %78 = tpu.matmul %75, %77, %cst_57 {dimension_numbers = #tpu.dot_dimension_numbers<[1], [0], [0], [1], [0, 0, 1, 1], [], []>} : vector<8x8xbf16>, vector<8x64xbf16>, vector<8x64xf32> -> vector<8x64xf32>
    %79 = arith.addf %70, %78 : vector<8x64xf32>
    %c22_i32_58 = arith.constant 22 : i32
    %80 = arith.addi %c22_i32_58, %arg2 : i32
    %c0_59 = arith.constant 0 : index
    %81 = arith.index_cast %80 : i32 to index
    %c1_60 = arith.constant 1 : index
    %c0_61 = arith.constant 0 : index
    %82 = vector.load %arg3[%c0_59, %81, %c1_60, %c0_61] : memref<1x44x11x8xbf16, #tpu.memory_space<vmem>>, vector<1x1x8x8xbf16>
    %83 = vector.shape_cast %82 : vector<1x1x8x8xbf16> to vector<1x8x8xbf16>
    %84 = vector.shape_cast %83 : vector<1x8x8xbf16> to vector<8x8xbf16>
    %c9 = arith.constant 9 : index
    %c0_62 = arith.constant 0 : index
    %c0_63 = arith.constant 0 : index
    %85 = vector.load %arg4[%c9, %c0_62, %c0_63] : memref<49x8x64xbf16, #tpu.memory_space<vmem>>, vector<1x8x64xbf16>
    %86 = vector.shape_cast %85 : vector<1x8x64xbf16> to vector<8x64xbf16>
    %cst_64 = arith.constant dense<0.000000e+00> : vector<8x64xf32>
    %87 = tpu.matmul %84, %86, %cst_64 {dimension_numbers = #tpu.dot_dimension_numbers<[1], [0], [0], [1], [0, 0, 1, 1], [], []>} : vector<8x8xbf16>, vector<8x64xbf16>, vector<8x64xf32> -> vector<8x64xf32>
    %88 = arith.addf %79, %87 : vector<8x64xf32>
    %c33_i32_65 = arith.constant 33 : i32
    %89 = arith.addi %c33_i32_65, %arg2 : i32
    %c0_66 = arith.constant 0 : index
    %90 = arith.index_cast %89 : i32 to index
    %c1_67 = arith.constant 1 : index
    %c0_68 = arith.constant 0 : index
    %91 = vector.load %arg3[%c0_66, %90, %c1_67, %c0_68] : memref<1x44x11x8xbf16, #tpu.memory_space<vmem>>, vector<1x1x8x8xbf16>
    %92 = vector.shape_cast %91 : vector<1x1x8x8xbf16> to vector<1x8x8xbf16>
    %93 = vector.shape_cast %92 : vector<1x8x8xbf16> to vector<8x8xbf16>
    %c10 = arith.constant 10 : index
    %c0_69 = arith.constant 0 : index
    %c0_70 = arith.constant 0 : index
    %94 = vector.load %arg4[%c10, %c0_69, %c0_70] : memref<49x8x64xbf16, #tpu.memory_space<vmem>>, vector<1x8x64xbf16>
    %95 = vector.shape_cast %94 : vector<1x8x64xbf16> to vector<8x64xbf16>
    %cst_71 = arith.constant dense<0.000000e+00> : vector<8x64xf32>
    %96 = tpu.matmul %93, %95, %cst_71 {dimension_numbers = #tpu.dot_dimension_numbers<[1], [0], [0], [1], [0, 0, 1, 1], [], []>} : vector<8x8xbf16>, vector<8x64xbf16>, vector<8x64xf32> -> vector<8x64xf32>
    %97 = arith.addf %88, %96 : vector<8x64xf32>
    %c22_i32_72 = arith.constant 22 : i32
    %98 = arith.addi %c22_i32_72, %arg2 : i32
    %c0_73 = arith.constant 0 : index
    %99 = arith.index_cast %98 : i32 to index
    %c2_74 = arith.constant 2 : index
    %c0_75 = arith.constant 0 : index
    %100 = vector.load %arg3[%c0_73, %99, %c2_74, %c0_75] : memref<1x44x11x8xbf16, #tpu.memory_space<vmem>>, vector<1x1x8x8xbf16>
    %101 = vector.shape_cast %100 : vector<1x1x8x8xbf16> to vector<1x8x8xbf16>
    %102 = vector.shape_cast %101 : vector<1x8x8xbf16> to vector<8x8xbf16>
    %c11 = arith.constant 11 : index
    %c0_76 = arith.constant 0 : index
    %c0_77 = arith.constant 0 : index
    %103 = vector.load %arg4[%c11, %c0_76, %c0_77] : memref<49x8x64xbf16, #tpu.memory_space<vmem>>, vector<1x8x64xbf16>
    %104 = vector.shape_cast %103 : vector<1x8x64xbf16> to vector<8x64xbf16>
    %cst_78 = arith.constant dense<0.000000e+00> : vector<8x64xf32>
    %105 = tpu.matmul %102, %104, %cst_78 {dimension_numbers = #tpu.dot_dimension_numbers<[1], [0], [0], [1], [0, 0, 1, 1], [], []>} : vector<8x8xbf16>, vector<8x64xbf16>, vector<8x64xf32> -> vector<8x64xf32>
    %106 = arith.addf %97, %105 : vector<8x64xf32>
    %c33_i32_79 = arith.constant 33 : i32
    %107 = arith.addi %c33_i32_79, %arg2 : i32
    %c0_80 = arith.constant 0 : index
    %108 = arith.index_cast %107 : i32 to index
    %c2_81 = arith.constant 2 : index
    %c0_82 = arith.constant 0 : index
    %109 = vector.load %arg3[%c0_80, %108, %c2_81, %c0_82] : memref<1x44x11x8xbf16, #tpu.memory_space<vmem>>, vector<1x1x8x8xbf16>
    %110 = vector.shape_cast %109 : vector<1x1x8x8xbf16> to vector<1x8x8xbf16>
    %111 = vector.shape_cast %110 : vector<1x8x8xbf16> to vector<8x8xbf16>
    %c12 = arith.constant 12 : index
    %c0_83 = arith.constant 0 : index
    %c0_84 = arith.constant 0 : index
    %112 = vector.load %arg4[%c12, %c0_83, %c0_84] : memref<49x8x64xbf16, #tpu.memory_space<vmem>>, vector<1x8x64xbf16>
    %113 = vector.shape_cast %112 : vector<1x8x64xbf16> to vector<8x64xbf16>
    %cst_85 = arith.constant dense<0.000000e+00> : vector<8x64xf32>
    %114 = tpu.matmul %111, %113, %cst_85 {dimension_numbers = #tpu.dot_dimension_numbers<[1], [0], [0], [1], [0, 0, 1, 1], [], []>} : vector<8x8xbf16>, vector<8x64xbf16>, vector<8x64xf32> -> vector<8x64xf32>
    %115 = arith.addf %106, %114 : vector<8x64xf32>
    %c22_i32_86 = arith.constant 22 : i32
    %116 = arith.addi %c22_i32_86, %arg2 : i32
    %c0_87 = arith.constant 0 : index
    %117 = arith.index_cast %116 : i32 to index
    %c3_88 = arith.constant 3 : index
    %c0_89 = arith.constant 0 : index
    %118 = vector.load %arg3[%c0_87, %117, %c3_88, %c0_89] : memref<1x44x11x8xbf16, #tpu.memory_space<vmem>>, vector<1x1x8x8xbf16>
    %119 = vector.shape_cast %118 : vector<1x1x8x8xbf16> to vector<1x8x8xbf16>
    %120 = vector.shape_cast %119 : vector<1x8x8xbf16> to vector<8x8xbf16>
    %c13 = arith.constant 13 : index
    %c0_90 = arith.constant 0 : index
    %c0_91 = arith.constant 0 : index
    %121 = vector.load %arg4[%c13, %c0_90, %c0_91] : memref<49x8x64xbf16, #tpu.memory_space<vmem>>, vector<1x8x64xbf16>
    %122 = vector.shape_cast %121 : vector<1x8x64xbf16> to vector<8x64xbf16>
    %cst_92 = arith.constant dense<0.000000e+00> : vector<8x64xf32>
    %123 = tpu.matmul %120, %122, %cst_92 {dimension_numbers = #tpu.dot_dimension_numbers<[1], [0], [0], [1], [0, 0, 1, 1], [], []>} : vector<8x8xbf16>, vector<8x64xbf16>, vector<8x64xf32> -> vector<8x64xf32>
    %124 = arith.addf %115, %123 : vector<8x64xf32>
    %c1_i32 = arith.constant 1 : i32
    %125 = arith.addi %c1_i32, %arg2 : i32
    %c0_93 = arith.constant 0 : index
    %126 = arith.index_cast %125 : i32 to index
    %c0_94 = arith.constant 0 : index
    %c0_95 = arith.constant 0 : index
    %127 = vector.load %arg3[%c0_93, %126, %c0_94, %c0_95] : memref<1x44x11x8xbf16, #tpu.memory_space<vmem>>, vector<1x1x8x8xbf16>
    %128 = vector.shape_cast %127 : vector<1x1x8x8xbf16> to vector<1x8x8xbf16>
    %129 = vector.shape_cast %128 : vector<1x8x8xbf16> to vector<8x8xbf16>
    %c14 = arith.constant 14 : index
    %c0_96 = arith.constant 0 : index
    %c0_97 = arith.constant 0 : index
    %130 = vector.load %arg4[%c14, %c0_96, %c0_97] : memref<49x8x64xbf16, #tpu.memory_space<vmem>>, vector<1x8x64xbf16>
    %131 = vector.shape_cast %130 : vector<1x8x64xbf16> to vector<8x64xbf16>
    %cst_98 = arith.constant dense<0.000000e+00> : vector<8x64xf32>
    %132 = tpu.matmul %129, %131, %cst_98 {dimension_numbers = #tpu.dot_dimension_numbers<[1], [0], [0], [1], [0, 0, 1, 1], [], []>} : vector<8x8xbf16>, vector<8x64xbf16>, vector<8x64xf32> -> vector<8x64xf32>
    %133 = arith.addf %124, %132 : vector<8x64xf32>
    %c12_i32 = arith.constant 12 : i32
    %134 = arith.addi %c12_i32, %arg2 : i32
    %c0_99 = arith.constant 0 : index
    %135 = arith.index_cast %134 : i32 to index
    %c0_100 = arith.constant 0 : index
    %c0_101 = arith.constant 0 : index
    %136 = vector.load %arg3[%c0_99, %135, %c0_100, %c0_101] : memref<1x44x11x8xbf16, #tpu.memory_space<vmem>>, vector<1x1x8x8xbf16>
    %137 = vector.shape_cast %136 : vector<1x1x8x8xbf16> to vector<1x8x8xbf16>
    %138 = vector.shape_cast %137 : vector<1x8x8xbf16> to vector<8x8xbf16>
    %c15 = arith.constant 15 : index
    %c0_102 = arith.constant 0 : index
    %c0_103 = arith.constant 0 : index
    %139 = vector.load %arg4[%c15, %c0_102, %c0_103] : memref<49x8x64xbf16, #tpu.memory_space<vmem>>, vector<1x8x64xbf16>
    %140 = vector.shape_cast %139 : vector<1x8x64xbf16> to vector<8x64xbf16>
    %cst_104 = arith.constant dense<0.000000e+00> : vector<8x64xf32>
    %141 = tpu.matmul %138, %140, %cst_104 {dimension_numbers = #tpu.dot_dimension_numbers<[1], [0], [0], [1], [0, 0, 1, 1], [], []>} : vector<8x8xbf16>, vector<8x64xbf16>, vector<8x64xf32> -> vector<8x64xf32>
    %142 = arith.addf %133, %141 : vector<8x64xf32>
    %c1_i32_105 = arith.constant 1 : i32
    %143 = arith.addi %c1_i32_105, %arg2 : i32
    %c0_106 = arith.constant 0 : index
    %144 = arith.index_cast %143 : i32 to index
    %c1_107 = arith.constant 1 : index
    %c0_108 = arith.constant 0 : index
    %145 = vector.load %arg3[%c0_106, %144, %c1_107, %c0_108] : memref<1x44x11x8xbf16, #tpu.memory_space<vmem>>, vector<1x1x8x8xbf16>
    %146 = vector.shape_cast %145 : vector<1x1x8x8xbf16> to vector<1x8x8xbf16>
    %147 = vector.shape_cast %146 : vector<1x8x8xbf16> to vector<8x8xbf16>
    %c16 = arith.constant 16 : index
    %c0_109 = arith.constant 0 : index
    %c0_110 = arith.constant 0 : index
    %148 = vector.load %arg4[%c16, %c0_109, %c0_110] : memref<49x8x64xbf16, #tpu.memory_space<vmem>>, vector<1x8x64xbf16>
    %149 = vector.shape_cast %148 : vector<1x8x64xbf16> to vector<8x64xbf16>
    %cst_111 = arith.constant dense<0.000000e+00> : vector<8x64xf32>
    %150 = tpu.matmul %147, %149, %cst_111 {dimension_numbers = #tpu.dot_dimension_numbers<[1], [0], [0], [1], [0, 0, 1, 1], [], []>} : vector<8x8xbf16>, vector<8x64xbf16>, vector<8x64xf32> -> vector<8x64xf32>
    %151 = arith.addf %142, %150 : vector<8x64xf32>
    %c12_i32_112 = arith.constant 12 : i32
    %152 = arith.addi %c12_i32_112, %arg2 : i32
    %c0_113 = arith.constant 0 : index
    %153 = arith.index_cast %152 : i32 to index
    %c1_114 = arith.constant 1 : index
    %c0_115 = arith.constant 0 : index
    %154 = vector.load %arg3[%c0_113, %153, %c1_114, %c0_115] : memref<1x44x11x8xbf16, #tpu.memory_space<vmem>>, vector<1x1x8x8xbf16>
    %155 = vector.shape_cast %154 : vector<1x1x8x8xbf16> to vector<1x8x8xbf16>
    %156 = vector.shape_cast %155 : vector<1x8x8xbf16> to vector<8x8xbf16>
    %c17 = arith.constant 17 : index
    %c0_116 = arith.constant 0 : index
    %c0_117 = arith.constant 0 : index
    %157 = vector.load %arg4[%c17, %c0_116, %c0_117] : memref<49x8x64xbf16, #tpu.memory_space<vmem>>, vector<1x8x64xbf16>
    %158 = vector.shape_cast %157 : vector<1x8x64xbf16> to vector<8x64xbf16>
    %cst_118 = arith.constant dense<0.000000e+00> : vector<8x64xf32>
    %159 = tpu.matmul %156, %158, %cst_118 {dimension_numbers = #tpu.dot_dimension_numbers<[1], [0], [0], [1], [0, 0, 1, 1], [], []>} : vector<8x8xbf16>, vector<8x64xbf16>, vector<8x64xf32> -> vector<8x64xf32>
    %160 = arith.addf %151, %159 : vector<8x64xf32>
    %c1_i32_119 = arith.constant 1 : i32
    %161 = arith.addi %c1_i32_119, %arg2 : i32
    %c0_120 = arith.constant 0 : index
    %162 = arith.index_cast %161 : i32 to index
    %c2_121 = arith.constant 2 : index
    %c0_122 = arith.constant 0 : index
    %163 = vector.load %arg3[%c0_120, %162, %c2_121, %c0_122] : memref<1x44x11x8xbf16, #tpu.memory_space<vmem>>, vector<1x1x8x8xbf16>
    %164 = vector.shape_cast %163 : vector<1x1x8x8xbf16> to vector<1x8x8xbf16>
    %165 = vector.shape_cast %164 : vector<1x8x8xbf16> to vector<8x8xbf16>
    %c18 = arith.constant 18 : index
    %c0_123 = arith.constant 0 : index
    %c0_124 = arith.constant 0 : index
    %166 = vector.load %arg4[%c18, %c0_123, %c0_124] : memref<49x8x64xbf16, #tpu.memory_space<vmem>>, vector<1x8x64xbf16>
    %167 = vector.shape_cast %166 : vector<1x8x64xbf16> to vector<8x64xbf16>
    %cst_125 = arith.constant dense<0.000000e+00> : vector<8x64xf32>
    %168 = tpu.matmul %165, %167, %cst_125 {dimension_numbers = #tpu.dot_dimension_numbers<[1], [0], [0], [1], [0, 0, 1, 1], [], []>} : vector<8x8xbf16>, vector<8x64xbf16>, vector<8x64xf32> -> vector<8x64xf32>
    %169 = arith.addf %160, %168 : vector<8x64xf32>
    %c12_i32_126 = arith.constant 12 : i32
    %170 = arith.addi %c12_i32_126, %arg2 : i32
    %c0_127 = arith.constant 0 : index
    %171 = arith.index_cast %170 : i32 to index
    %c2_128 = arith.constant 2 : index
    %c0_129 = arith.constant 0 : index
    %172 = vector.load %arg3[%c0_127, %171, %c2_128, %c0_129] : memref<1x44x11x8xbf16, #tpu.memory_space<vmem>>, vector<1x1x8x8xbf16>
    %173 = vector.shape_cast %172 : vector<1x1x8x8xbf16> to vector<1x8x8xbf16>
    %174 = vector.shape_cast %173 : vector<1x8x8xbf16> to vector<8x8xbf16>
    %c19 = arith.constant 19 : index
    %c0_130 = arith.constant 0 : index
    %c0_131 = arith.constant 0 : index
    %175 = vector.load %arg4[%c19, %c0_130, %c0_131] : memref<49x8x64xbf16, #tpu.memory_space<vmem>>, vector<1x8x64xbf16>
    %176 = vector.shape_cast %175 : vector<1x8x64xbf16> to vector<8x64xbf16>
    %cst_132 = arith.constant dense<0.000000e+00> : vector<8x64xf32>
    %177 = tpu.matmul %174, %176, %cst_132 {dimension_numbers = #tpu.dot_dimension_numbers<[1], [0], [0], [1], [0, 0, 1, 1], [], []>} : vector<8x8xbf16>, vector<8x64xbf16>, vector<8x64xf32> -> vector<8x64xf32>
    %178 = arith.addf %169, %177 : vector<8x64xf32>
    %c1_i32_133 = arith.constant 1 : i32
    %179 = arith.addi %c1_i32_133, %arg2 : i32
    %c0_134 = arith.constant 0 : index
    %180 = arith.index_cast %179 : i32 to index
    %c3_135 = arith.constant 3 : index
    %c0_136 = arith.constant 0 : index
    %181 = vector.load %arg3[%c0_134, %180, %c3_135, %c0_136] : memref<1x44x11x8xbf16, #tpu.memory_space<vmem>>, vector<1x1x8x8xbf16>
    %182 = vector.shape_cast %181 : vector<1x1x8x8xbf16> to vector<1x8x8xbf16>
    %183 = vector.shape_cast %182 : vector<1x8x8xbf16> to vector<8x8xbf16>
    %c20 = arith.constant 20 : index
    %c0_137 = arith.constant 0 : index
    %c0_138 = arith.constant 0 : index
    %184 = vector.load %arg4[%c20, %c0_137, %c0_138] : memref<49x8x64xbf16, #tpu.memory_space<vmem>>, vector<1x8x64xbf16>
    %185 = vector.shape_cast %184 : vector<1x8x64xbf16> to vector<8x64xbf16>
    %cst_139 = arith.constant dense<0.000000e+00> : vector<8x64xf32>
    %186 = tpu.matmul %183, %185, %cst_139 {dimension_numbers = #tpu.dot_dimension_numbers<[1], [0], [0], [1], [0, 0, 1, 1], [], []>} : vector<8x8xbf16>, vector<8x64xbf16>, vector<8x64xf32> -> vector<8x64xf32>
    %187 = arith.addf %178, %186 : vector<8x64xf32>
    %c23_i32 = arith.constant 23 : i32
    %188 = arith.addi %c23_i32, %arg2 : i32
    %c0_140 = arith.constant 0 : index
    %189 = arith.index_cast %188 : i32 to index
    %c0_141 = arith.constant 0 : index
    %c0_142 = arith.constant 0 : index
    %190 = vector.load %arg3[%c0_140, %189, %c0_141, %c0_142] : memref<1x44x11x8xbf16, #tpu.memory_space<vmem>>, vector<1x1x8x8xbf16>
    %191 = vector.shape_cast %190 : vector<1x1x8x8xbf16> to vector<1x8x8xbf16>
    %192 = vector.shape_cast %191 : vector<1x8x8xbf16> to vector<8x8xbf16>
    %c21 = arith.constant 21 : index
    %c0_143 = arith.constant 0 : index
    %c0_144 = arith.constant 0 : index
    %193 = vector.load %arg4[%c21, %c0_143, %c0_144] : memref<49x8x64xbf16, #tpu.memory_space<vmem>>, vector<1x8x64xbf16>
    %194 = vector.shape_cast %193 : vector<1x8x64xbf16> to vector<8x64xbf16>
    %cst_145 = arith.constant dense<0.000000e+00> : vector<8x64xf32>
    %195 = tpu.matmul %192, %194, %cst_145 {dimension_numbers = #tpu.dot_dimension_numbers<[1], [0], [0], [1], [0, 0, 1, 1], [], []>} : vector<8x8xbf16>, vector<8x64xbf16>, vector<8x64xf32> -> vector<8x64xf32>
    %196 = arith.addf %187, %195 : vector<8x64xf32>
    %c34_i32 = arith.constant 34 : i32
    %197 = arith.addi %c34_i32, %arg2 : i32
    %c0_146 = arith.constant 0 : index
    %198 = arith.index_cast %197 : i32 to index
    %c0_147 = arith.constant 0 : index
    %c0_148 = arith.constant 0 : index
    %199 = vector.load %arg3[%c0_146, %198, %c0_147, %c0_148] : memref<1x44x11x8xbf16, #tpu.memory_space<vmem>>, vector<1x1x8x8xbf16>
    %200 = vector.shape_cast %199 : vector<1x1x8x8xbf16> to vector<1x8x8xbf16>
    %201 = vector.shape_cast %200 : vector<1x8x8xbf16> to vector<8x8xbf16>
    %c22 = arith.constant 22 : index
    %c0_149 = arith.constant 0 : index
    %c0_150 = arith.constant 0 : index
    %202 = vector.load %arg4[%c22, %c0_149, %c0_150] : memref<49x8x64xbf16, #tpu.memory_space<vmem>>, vector<1x8x64xbf16>
    %203 = vector.shape_cast %202 : vector<1x8x64xbf16> to vector<8x64xbf16>
    %cst_151 = arith.constant dense<0.000000e+00> : vector<8x64xf32>
    %204 = tpu.matmul %201, %203, %cst_151 {dimension_numbers = #tpu.dot_dimension_numbers<[1], [0], [0], [1], [0, 0, 1, 1], [], []>} : vector<8x8xbf16>, vector<8x64xbf16>, vector<8x64xf32> -> vector<8x64xf32>
    %205 = arith.addf %196, %204 : vector<8x64xf32>
    %c23_i32_152 = arith.constant 23 : i32
    %206 = arith.addi %c23_i32_152, %arg2 : i32
    %c0_153 = arith.constant 0 : index
    %207 = arith.index_cast %206 : i32 to index
    %c1_154 = arith.constant 1 : index
    %c0_155 = arith.constant 0 : index
    %208 = vector.load %arg3[%c0_153, %207, %c1_154, %c0_155] : memref<1x44x11x8xbf16, #tpu.memory_space<vmem>>, vector<1x1x8x8xbf16>
    %209 = vector.shape_cast %208 : vector<1x1x8x8xbf16> to vector<1x8x8xbf16>
    %210 = vector.shape_cast %209 : vector<1x8x8xbf16> to vector<8x8xbf16>
    %c23 = arith.constant 23 : index
    %c0_156 = arith.constant 0 : index
    %c0_157 = arith.constant 0 : index
    %211 = vector.load %arg4[%c23, %c0_156, %c0_157] : memref<49x8x64xbf16, #tpu.memory_space<vmem>>, vector<1x8x64xbf16>
    %212 = vector.shape_cast %211 : vector<1x8x64xbf16> to vector<8x64xbf16>
    %cst_158 = arith.constant dense<0.000000e+00> : vector<8x64xf32>
    %213 = tpu.matmul %210, %212, %cst_158 {dimension_numbers = #tpu.dot_dimension_numbers<[1], [0], [0], [1], [0, 0, 1, 1], [], []>} : vector<8x8xbf16>, vector<8x64xbf16>, vector<8x64xf32> -> vector<8x64xf32>
    %214 = arith.addf %205, %213 : vector<8x64xf32>
    %c34_i32_159 = arith.constant 34 : i32
    %215 = arith.addi %c34_i32_159, %arg2 : i32
    %c0_160 = arith.constant 0 : index
    %216 = arith.index_cast %215 : i32 to index
    %c1_161 = arith.constant 1 : index
    %c0_162 = arith.constant 0 : index
    %217 = vector.load %arg3[%c0_160, %216, %c1_161, %c0_162] : memref<1x44x11x8xbf16, #tpu.memory_space<vmem>>, vector<1x1x8x8xbf16>
    %218 = vector.shape_cast %217 : vector<1x1x8x8xbf16> to vector<1x8x8xbf16>
    %219 = vector.shape_cast %218 : vector<1x8x8xbf16> to vector<8x8xbf16>
    %c24 = arith.constant 24 : index
    %c0_163 = arith.constant 0 : index
    %c0_164 = arith.constant 0 : index
    %220 = vector.load %arg4[%c24, %c0_163, %c0_164] : memref<49x8x64xbf16, #tpu.memory_space<vmem>>, vector<1x8x64xbf16>
    %221 = vector.shape_cast %220 : vector<1x8x64xbf16> to vector<8x64xbf16>
    %cst_165 = arith.constant dense<0.000000e+00> : vector<8x64xf32>
    %222 = tpu.matmul %219, %221, %cst_165 {dimension_numbers = #tpu.dot_dimension_numbers<[1], [0], [0], [1], [0, 0, 1, 1], [], []>} : vector<8x8xbf16>, vector<8x64xbf16>, vector<8x64xf32> -> vector<8x64xf32>
    %223 = arith.addf %214, %222 : vector<8x64xf32>
    %c23_i32_166 = arith.constant 23 : i32
    %224 = arith.addi %c23_i32_166, %arg2 : i32
    %c0_167 = arith.constant 0 : index
    %225 = arith.index_cast %224 : i32 to index
    %c2_168 = arith.constant 2 : index
    %c0_169 = arith.constant 0 : index
    %226 = vector.load %arg3[%c0_167, %225, %c2_168, %c0_169] : memref<1x44x11x8xbf16, #tpu.memory_space<vmem>>, vector<1x1x8x8xbf16>
    %227 = vector.shape_cast %226 : vector<1x1x8x8xbf16> to vector<1x8x8xbf16>
    %228 = vector.shape_cast %227 : vector<1x8x8xbf16> to vector<8x8xbf16>
    %c25 = arith.constant 25 : index
    %c0_170 = arith.constant 0 : index
    %c0_171 = arith.constant 0 : index
    %229 = vector.load %arg4[%c25, %c0_170, %c0_171] : memref<49x8x64xbf16, #tpu.memory_space<vmem>>, vector<1x8x64xbf16>
    %230 = vector.shape_cast %229 : vector<1x8x64xbf16> to vector<8x64xbf16>
    %cst_172 = arith.constant dense<0.000000e+00> : vector<8x64xf32>
    %231 = tpu.matmul %228, %230, %cst_172 {dimension_numbers = #tpu.dot_dimension_numbers<[1], [0], [0], [1], [0, 0, 1, 1], [], []>} : vector<8x8xbf16>, vector<8x64xbf16>, vector<8x64xf32> -> vector<8x64xf32>
    %232 = arith.addf %223, %231 : vector<8x64xf32>
    %c34_i32_173 = arith.constant 34 : i32
    %233 = arith.addi %c34_i32_173, %arg2 : i32
    %c0_174 = arith.constant 0 : index
    %234 = arith.index_cast %233 : i32 to index
    %c2_175 = arith.constant 2 : index
    %c0_176 = arith.constant 0 : index
    %235 = vector.load %arg3[%c0_174, %234, %c2_175, %c0_176] : memref<1x44x11x8xbf16, #tpu.memory_space<vmem>>, vector<1x1x8x8xbf16>
    %236 = vector.shape_cast %235 : vector<1x1x8x8xbf16> to vector<1x8x8xbf16>
    %237 = vector.shape_cast %236 : vector<1x8x8xbf16> to vector<8x8xbf16>
    %c26 = arith.constant 26 : index
    %c0_177 = arith.constant 0 : index
    %c0_178 = arith.constant 0 : index
    %238 = vector.load %arg4[%c26, %c0_177, %c0_178] : memref<49x8x64xbf16, #tpu.memory_space<vmem>>, vector<1x8x64xbf16>
    %239 = vector.shape_cast %238 : vector<1x8x64xbf16> to vector<8x64xbf16>
    %cst_179 = arith.constant dense<0.000000e+00> : vector<8x64xf32>
    %240 = tpu.matmul %237, %239, %cst_179 {dimension_numbers = #tpu.dot_dimension_numbers<[1], [0], [0], [1], [0, 0, 1, 1], [], []>} : vector<8x8xbf16>, vector<8x64xbf16>, vector<8x64xf32> -> vector<8x64xf32>
    %241 = arith.addf %232, %240 : vector<8x64xf32>
    %c23_i32_180 = arith.constant 23 : i32
    %242 = arith.addi %c23_i32_180, %arg2 : i32
    %c0_181 = arith.constant 0 : index
    %243 = arith.index_cast %242 : i32 to index
    %c3_182 = arith.constant 3 : index
    %c0_183 = arith.constant 0 : index
    %244 = vector.load %arg3[%c0_181, %243, %c3_182, %c0_183] : memref<1x44x11x8xbf16, #tpu.memory_space<vmem>>, vector<1x1x8x8xbf16>
    %245 = vector.shape_cast %244 : vector<1x1x8x8xbf16> to vector<1x8x8xbf16>
    %246 = vector.shape_cast %245 : vector<1x8x8xbf16> to vector<8x8xbf16>
    %c27 = arith.constant 27 : index
    %c0_184 = arith.constant 0 : index
    %c0_185 = arith.constant 0 : index
    %247 = vector.load %arg4[%c27, %c0_184, %c0_185] : memref<49x8x64xbf16, #tpu.memory_space<vmem>>, vector<1x8x64xbf16>
    %248 = vector.shape_cast %247 : vector<1x8x64xbf16> to vector<8x64xbf16>
    %cst_186 = arith.constant dense<0.000000e+00> : vector<8x64xf32>
    %249 = tpu.matmul %246, %248, %cst_186 {dimension_numbers = #tpu.dot_dimension_numbers<[1], [0], [0], [1], [0, 0, 1, 1], [], []>} : vector<8x8xbf16>, vector<8x64xbf16>, vector<8x64xf32> -> vector<8x64xf32>
    %250 = arith.addf %241, %249 : vector<8x64xf32>
    %c2_i32 = arith.constant 2 : i32
    %251 = arith.addi %c2_i32, %arg2 : i32
    %c0_187 = arith.constant 0 : index
    %252 = arith.index_cast %251 : i32 to index
    %c0_188 = arith.constant 0 : index
    %c0_189 = arith.constant 0 : index
    %253 = vector.load %arg3[%c0_187, %252, %c0_188, %c0_189] : memref<1x44x11x8xbf16, #tpu.memory_space<vmem>>, vector<1x1x8x8xbf16>
    %254 = vector.shape_cast %253 : vector<1x1x8x8xbf16> to vector<1x8x8xbf16>
    %255 = vector.shape_cast %254 : vector<1x8x8xbf16> to vector<8x8xbf16>
    %c28 = arith.constant 28 : index
    %c0_190 = arith.constant 0 : index
    %c0_191 = arith.constant 0 : index
    %256 = vector.load %arg4[%c28, %c0_190, %c0_191] : memref<49x8x64xbf16, #tpu.memory_space<vmem>>, vector<1x8x64xbf16>
    %257 = vector.shape_cast %256 : vector<1x8x64xbf16> to vector<8x64xbf16>
    %cst_192 = arith.constant dense<0.000000e+00> : vector<8x64xf32>
    %258 = tpu.matmul %255, %257, %cst_192 {dimension_numbers = #tpu.dot_dimension_numbers<[1], [0], [0], [1], [0, 0, 1, 1], [], []>} : vector<8x8xbf16>, vector<8x64xbf16>, vector<8x64xf32> -> vector<8x64xf32>
    %259 = arith.addf %250, %258 : vector<8x64xf32>
    %c13_i32 = arith.constant 13 : i32
    %260 = arith.addi %c13_i32, %arg2 : i32
    %c0_193 = arith.constant 0 : index
    %261 = arith.index_cast %260 : i32 to index
    %c0_194 = arith.constant 0 : index
    %c0_195 = arith.constant 0 : index
    %262 = vector.load %arg3[%c0_193, %261, %c0_194, %c0_195] : memref<1x44x11x8xbf16, #tpu.memory_space<vmem>>, vector<1x1x8x8xbf16>
    %263 = vector.shape_cast %262 : vector<1x1x8x8xbf16> to vector<1x8x8xbf16>
    %264 = vector.shape_cast %263 : vector<1x8x8xbf16> to vector<8x8xbf16>
    %c29 = arith.constant 29 : index
    %c0_196 = arith.constant 0 : index
    %c0_197 = arith.constant 0 : index
    %265 = vector.load %arg4[%c29, %c0_196, %c0_197] : memref<49x8x64xbf16, #tpu.memory_space<vmem>>, vector<1x8x64xbf16>
    %266 = vector.shape_cast %265 : vector<1x8x64xbf16> to vector<8x64xbf16>
    %cst_198 = arith.constant dense<0.000000e+00> : vector<8x64xf32>
    %267 = tpu.matmul %264, %266, %cst_198 {dimension_numbers = #tpu.dot_dimension_numbers<[1], [0], [0], [1], [0, 0, 1, 1], [], []>} : vector<8x8xbf16>, vector<8x64xbf16>, vector<8x64xf32> -> vector<8x64xf32>
    %268 = arith.addf %259, %267 : vector<8x64xf32>
    %c2_i32_199 = arith.constant 2 : i32
    %269 = arith.addi %c2_i32_199, %arg2 : i32
    %c0_200 = arith.constant 0 : index
    %270 = arith.index_cast %269 : i32 to index
    %c1_201 = arith.constant 1 : index
    %c0_202 = arith.constant 0 : index
    %271 = vector.load %arg3[%c0_200, %270, %c1_201, %c0_202] : memref<1x44x11x8xbf16, #tpu.memory_space<vmem>>, vector<1x1x8x8xbf16>
    %272 = vector.shape_cast %271 : vector<1x1x8x8xbf16> to vector<1x8x8xbf16>
    %273 = vector.shape_cast %272 : vector<1x8x8xbf16> to vector<8x8xbf16>
    %c30 = arith.constant 30 : index
    %c0_203 = arith.constant 0 : index
    %c0_204 = arith.constant 0 : index
    %274 = vector.load %arg4[%c30, %c0_203, %c0_204] : memref<49x8x64xbf16, #tpu.memory_space<vmem>>, vector<1x8x64xbf16>
    %275 = vector.shape_cast %274 : vector<1x8x64xbf16> to vector<8x64xbf16>
    %cst_205 = arith.constant dense<0.000000e+00> : vector<8x64xf32>
    %276 = tpu.matmul %273, %275, %cst_205 {dimension_numbers = #tpu.dot_dimension_numbers<[1], [0], [0], [1], [0, 0, 1, 1], [], []>} : vector<8x8xbf16>, vector<8x64xbf16>, vector<8x64xf32> -> vector<8x64xf32>
    %277 = arith.addf %268, %276 : vector<8x64xf32>
    %c13_i32_206 = arith.constant 13 : i32
    %278 = arith.addi %c13_i32_206, %arg2 : i32
    %c0_207 = arith.constant 0 : index
    %279 = arith.index_cast %278 : i32 to index
    %c1_208 = arith.constant 1 : index
    %c0_209 = arith.constant 0 : index
    %280 = vector.load %arg3[%c0_207, %279, %c1_208, %c0_209] : memref<1x44x11x8xbf16, #tpu.memory_space<vmem>>, vector<1x1x8x8xbf16>
    %281 = vector.shape_cast %280 : vector<1x1x8x8xbf16> to vector<1x8x8xbf16>
    %282 = vector.shape_cast %281 : vector<1x8x8xbf16> to vector<8x8xbf16>
    %c31 = arith.constant 31 : index
    %c0_210 = arith.constant 0 : index
    %c0_211 = arith.constant 0 : index
    %283 = vector.load %arg4[%c31, %c0_210, %c0_211] : memref<49x8x64xbf16, #tpu.memory_space<vmem>>, vector<1x8x64xbf16>
    %284 = vector.shape_cast %283 : vector<1x8x64xbf16> to vector<8x64xbf16>
    %cst_212 = arith.constant dense<0.000000e+00> : vector<8x64xf32>
    %285 = tpu.matmul %282, %284, %cst_212 {dimension_numbers = #tpu.dot_dimension_numbers<[1], [0], [0], [1], [0, 0, 1, 1], [], []>} : vector<8x8xbf16>, vector<8x64xbf16>, vector<8x64xf32> -> vector<8x64xf32>
    %286 = arith.addf %277, %285 : vector<8x64xf32>
    %c2_i32_213 = arith.constant 2 : i32
    %287 = arith.addi %c2_i32_213, %arg2 : i32
    %c0_214 = arith.constant 0 : index
    %288 = arith.index_cast %287 : i32 to index
    %c2_215 = arith.constant 2 : index
    %c0_216 = arith.constant 0 : index
    %289 = vector.load %arg3[%c0_214, %288, %c2_215, %c0_216] : memref<1x44x11x8xbf16, #tpu.memory_space<vmem>>, vector<1x1x8x8xbf16>
    %290 = vector.shape_cast %289 : vector<1x1x8x8xbf16> to vector<1x8x8xbf16>
    %291 = vector.shape_cast %290 : vector<1x8x8xbf16> to vector<8x8xbf16>
    %c32 = arith.constant 32 : index
    %c0_217 = arith.constant 0 : index
    %c0_218 = arith.constant 0 : index
    %292 = vector.load %arg4[%c32, %c0_217, %c0_218] : memref<49x8x64xbf16, #tpu.memory_space<vmem>>, vector<1x8x64xbf16>
    %293 = vector.shape_cast %292 : vector<1x8x64xbf16> to vector<8x64xbf16>
    %cst_219 = arith.constant dense<0.000000e+00> : vector<8x64xf32>
    %294 = tpu.matmul %291, %293, %cst_219 {dimension_numbers = #tpu.dot_dimension_numbers<[1], [0], [0], [1], [0, 0, 1, 1], [], []>} : vector<8x8xbf16>, vector<8x64xbf16>, vector<8x64xf32> -> vector<8x64xf32>
    %295 = arith.addf %286, %294 : vector<8x64xf32>
    %c13_i32_220 = arith.constant 13 : i32
    %296 = arith.addi %c13_i32_220, %arg2 : i32
    %c0_221 = arith.constant 0 : index
    %297 = arith.index_cast %296 : i32 to index
    %c2_222 = arith.constant 2 : index
    %c0_223 = arith.constant 0 : index
    %298 = vector.load %arg3[%c0_221, %297, %c2_222, %c0_223] : memref<1x44x11x8xbf16, #tpu.memory_space<vmem>>, vector<1x1x8x8xbf16>
    %299 = vector.shape_cast %298 : vector<1x1x8x8xbf16> to vector<1x8x8xbf16>
    %300 = vector.shape_cast %299 : vector<1x8x8xbf16> to vector<8x8xbf16>
    %c33 = arith.constant 33 : index
    %c0_224 = arith.constant 0 : index
    %c0_225 = arith.constant 0 : index
    %301 = vector.load %arg4[%c33, %c0_224, %c0_225] : memref<49x8x64xbf16, #tpu.memory_space<vmem>>, vector<1x8x64xbf16>
    %302 = vector.shape_cast %301 : vector<1x8x64xbf16> to vector<8x64xbf16>
    %cst_226 = arith.constant dense<0.000000e+00> : vector<8x64xf32>
    %303 = tpu.matmul %300, %302, %cst_226 {dimension_numbers = #tpu.dot_dimension_numbers<[1], [0], [0], [1], [0, 0, 1, 1], [], []>} : vector<8x8xbf16>, vector<8x64xbf16>, vector<8x64xf32> -> vector<8x64xf32>
    %304 = arith.addf %295, %303 : vector<8x64xf32>
    %c2_i32_227 = arith.constant 2 : i32
    %305 = arith.addi %c2_i32_227, %arg2 : i32
    %c0_228 = arith.constant 0 : index
    %306 = arith.index_cast %305 : i32 to index
    %c3_229 = arith.constant 3 : index
    %c0_230 = arith.constant 0 : index
    %307 = vector.load %arg3[%c0_228, %306, %c3_229, %c0_230] : memref<1x44x11x8xbf16, #tpu.memory_space<vmem>>, vector<1x1x8x8xbf16>
    %308 = vector.shape_cast %307 : vector<1x1x8x8xbf16> to vector<1x8x8xbf16>
    %309 = vector.shape_cast %308 : vector<1x8x8xbf16> to vector<8x8xbf16>
    %c34 = arith.constant 34 : index
    %c0_231 = arith.constant 0 : index
    %c0_232 = arith.constant 0 : index
    %310 = vector.load %arg4[%c34, %c0_231, %c0_232] : memref<49x8x64xbf16, #tpu.memory_space<vmem>>, vector<1x8x64xbf16>
    %311 = vector.shape_cast %310 : vector<1x8x64xbf16> to vector<8x64xbf16>
    %cst_233 = arith.constant dense<0.000000e+00> : vector<8x64xf32>
    %312 = tpu.matmul %309, %311, %cst_233 {dimension_numbers = #tpu.dot_dimension_numbers<[1], [0], [0], [1], [0, 0, 1, 1], [], []>} : vector<8x8xbf16>, vector<8x64xbf16>, vector<8x64xf32> -> vector<8x64xf32>
    %313 = arith.addf %304, %312 : vector<8x64xf32>
    %c24_i32 = arith.constant 24 : i32
    %314 = arith.addi %c24_i32, %arg2 : i32
    %c0_234 = arith.constant 0 : index
    %315 = arith.index_cast %314 : i32 to index
    %c0_235 = arith.constant 0 : index
    %c0_236 = arith.constant 0 : index
    %316 = vector.load %arg3[%c0_234, %315, %c0_235, %c0_236] : memref<1x44x11x8xbf16, #tpu.memory_space<vmem>>, vector<1x1x8x8xbf16>
    %317 = vector.shape_cast %316 : vector<1x1x8x8xbf16> to vector<1x8x8xbf16>
    %318 = vector.shape_cast %317 : vector<1x8x8xbf16> to vector<8x8xbf16>
    %c35 = arith.constant 35 : index
    %c0_237 = arith.constant 0 : index
    %c0_238 = arith.constant 0 : index
    %319 = vector.load %arg4[%c35, %c0_237, %c0_238] : memref<49x8x64xbf16, #tpu.memory_space<vmem>>, vector<1x8x64xbf16>
    %320 = vector.shape_cast %319 : vector<1x8x64xbf16> to vector<8x64xbf16>
    %cst_239 = arith.constant dense<0.000000e+00> : vector<8x64xf32>
    %321 = tpu.matmul %318, %320, %cst_239 {dimension_numbers = #tpu.dot_dimension_numbers<[1], [0], [0], [1], [0, 0, 1, 1], [], []>} : vector<8x8xbf16>, vector<8x64xbf16>, vector<8x64xf32> -> vector<8x64xf32>
    %322 = arith.addf %313, %321 : vector<8x64xf32>
    %c35_i32 = arith.constant 35 : i32
    %323 = arith.addi %c35_i32, %arg2 : i32
    %c0_240 = arith.constant 0 : index
    %324 = arith.index_cast %323 : i32 to index
    %c0_241 = arith.constant 0 : index
    %c0_242 = arith.constant 0 : index
    %325 = vector.load %arg3[%c0_240, %324, %c0_241, %c0_242] : memref<1x44x11x8xbf16, #tpu.memory_space<vmem>>, vector<1x1x8x8xbf16>
    %326 = vector.shape_cast %325 : vector<1x1x8x8xbf16> to vector<1x8x8xbf16>
    %327 = vector.shape_cast %326 : vector<1x8x8xbf16> to vector<8x8xbf16>
    %c36 = arith.constant 36 : index
    %c0_243 = arith.constant 0 : index
    %c0_244 = arith.constant 0 : index
    %328 = vector.load %arg4[%c36, %c0_243, %c0_244] : memref<49x8x64xbf16, #tpu.memory_space<vmem>>, vector<1x8x64xbf16>
    %329 = vector.shape_cast %328 : vector<1x8x64xbf16> to vector<8x64xbf16>
    %cst_245 = arith.constant dense<0.000000e+00> : vector<8x64xf32>
    %330 = tpu.matmul %327, %329, %cst_245 {dimension_numbers = #tpu.dot_dimension_numbers<[1], [0], [0], [1], [0, 0, 1, 1], [], []>} : vector<8x8xbf16>, vector<8x64xbf16>, vector<8x64xf32> -> vector<8x64xf32>
    %331 = arith.addf %322, %330 : vector<8x64xf32>
    %c24_i32_246 = arith.constant 24 : i32
    %332 = arith.addi %c24_i32_246, %arg2 : i32
    %c0_247 = arith.constant 0 : index
    %333 = arith.index_cast %332 : i32 to index
    %c1_248 = arith.constant 1 : index
    %c0_249 = arith.constant 0 : index
    %334 = vector.load %arg3[%c0_247, %333, %c1_248, %c0_249] : memref<1x44x11x8xbf16, #tpu.memory_space<vmem>>, vector<1x1x8x8xbf16>
    %335 = vector.shape_cast %334 : vector<1x1x8x8xbf16> to vector<1x8x8xbf16>
    %336 = vector.shape_cast %335 : vector<1x8x8xbf16> to vector<8x8xbf16>
    %c37 = arith.constant 37 : index
    %c0_250 = arith.constant 0 : index
    %c0_251 = arith.constant 0 : index
    %337 = vector.load %arg4[%c37, %c0_250, %c0_251] : memref<49x8x64xbf16, #tpu.memory_space<vmem>>, vector<1x8x64xbf16>
    %338 = vector.shape_cast %337 : vector<1x8x64xbf16> to vector<8x64xbf16>
    %cst_252 = arith.constant dense<0.000000e+00> : vector<8x64xf32>
    %339 = tpu.matmul %336, %338, %cst_252 {dimension_numbers = #tpu.dot_dimension_numbers<[1], [0], [0], [1], [0, 0, 1, 1], [], []>} : vector<8x8xbf16>, vector<8x64xbf16>, vector<8x64xf32> -> vector<8x64xf32>
    %340 = arith.addf %331, %339 : vector<8x64xf32>
    %c35_i32_253 = arith.constant 35 : i32
    %341 = arith.addi %c35_i32_253, %arg2 : i32
    %c0_254 = arith.constant 0 : index
    %342 = arith.index_cast %341 : i32 to index
    %c1_255 = arith.constant 1 : index
    %c0_256 = arith.constant 0 : index
    %343 = vector.load %arg3[%c0_254, %342, %c1_255, %c0_256] : memref<1x44x11x8xbf16, #tpu.memory_space<vmem>>, vector<1x1x8x8xbf16>
    %344 = vector.shape_cast %343 : vector<1x1x8x8xbf16> to vector<1x8x8xbf16>
    %345 = vector.shape_cast %344 : vector<1x8x8xbf16> to vector<8x8xbf16>
    %c38 = arith.constant 38 : index
    %c0_257 = arith.constant 0 : index
    %c0_258 = arith.constant 0 : index
    %346 = vector.load %arg4[%c38, %c0_257, %c0_258] : memref<49x8x64xbf16, #tpu.memory_space<vmem>>, vector<1x8x64xbf16>
    %347 = vector.shape_cast %346 : vector<1x8x64xbf16> to vector<8x64xbf16>
    %cst_259 = arith.constant dense<0.000000e+00> : vector<8x64xf32>
    %348 = tpu.matmul %345, %347, %cst_259 {dimension_numbers = #tpu.dot_dimension_numbers<[1], [0], [0], [1], [0, 0, 1, 1], [], []>} : vector<8x8xbf16>, vector<8x64xbf16>, vector<8x64xf32> -> vector<8x64xf32>
    %349 = arith.addf %340, %348 : vector<8x64xf32>
    %c24_i32_260 = arith.constant 24 : i32
    %350 = arith.addi %c24_i32_260, %arg2 : i32
    %c0_261 = arith.constant 0 : index
    %351 = arith.index_cast %350 : i32 to index
    %c2_262 = arith.constant 2 : index
    %c0_263 = arith.constant 0 : index
    %352 = vector.load %arg3[%c0_261, %351, %c2_262, %c0_263] : memref<1x44x11x8xbf16, #tpu.memory_space<vmem>>, vector<1x1x8x8xbf16>
    %353 = vector.shape_cast %352 : vector<1x1x8x8xbf16> to vector<1x8x8xbf16>
    %354 = vector.shape_cast %353 : vector<1x8x8xbf16> to vector<8x8xbf16>
    %c39 = arith.constant 39 : index
    %c0_264 = arith.constant 0 : index
    %c0_265 = arith.constant 0 : index
    %355 = vector.load %arg4[%c39, %c0_264, %c0_265] : memref<49x8x64xbf16, #tpu.memory_space<vmem>>, vector<1x8x64xbf16>
    %356 = vector.shape_cast %355 : vector<1x8x64xbf16> to vector<8x64xbf16>
    %cst_266 = arith.constant dense<0.000000e+00> : vector<8x64xf32>
    %357 = tpu.matmul %354, %356, %cst_266 {dimension_numbers = #tpu.dot_dimension_numbers<[1], [0], [0], [1], [0, 0, 1, 1], [], []>} : vector<8x8xbf16>, vector<8x64xbf16>, vector<8x64xf32> -> vector<8x64xf32>
    %358 = arith.addf %349, %357 : vector<8x64xf32>
    %c35_i32_267 = arith.constant 35 : i32
    %359 = arith.addi %c35_i32_267, %arg2 : i32
    %c0_268 = arith.constant 0 : index
    %360 = arith.index_cast %359 : i32 to index
    %c2_269 = arith.constant 2 : index
    %c0_270 = arith.constant 0 : index
    %361 = vector.load %arg3[%c0_268, %360, %c2_269, %c0_270] : memref<1x44x11x8xbf16, #tpu.memory_space<vmem>>, vector<1x1x8x8xbf16>
    %362 = vector.shape_cast %361 : vector<1x1x8x8xbf16> to vector<1x8x8xbf16>
    %363 = vector.shape_cast %362 : vector<1x8x8xbf16> to vector<8x8xbf16>
    %c40 = arith.constant 40 : index
    %c0_271 = arith.constant 0 : index
    %c0_272 = arith.constant 0 : index
    %364 = vector.load %arg4[%c40, %c0_271, %c0_272] : memref<49x8x64xbf16, #tpu.memory_space<vmem>>, vector<1x8x64xbf16>
    %365 = vector.shape_cast %364 : vector<1x8x64xbf16> to vector<8x64xbf16>
    %cst_273 = arith.constant dense<0.000000e+00> : vector<8x64xf32>
    %366 = tpu.matmul %363, %365, %cst_273 {dimension_numbers = #tpu.dot_dimension_numbers<[1], [0], [0], [1], [0, 0, 1, 1], [], []>} : vector<8x8xbf16>, vector<8x64xbf16>, vector<8x64xf32> -> vector<8x64xf32>
    %367 = arith.addf %358, %366 : vector<8x64xf32>
    %c24_i32_274 = arith.constant 24 : i32
    %368 = arith.addi %c24_i32_274, %arg2 : i32
    %c0_275 = arith.constant 0 : index
    %369 = arith.index_cast %368 : i32 to index
    %c3_276 = arith.constant 3 : index
    %c0_277 = arith.constant 0 : index
    %370 = vector.load %arg3[%c0_275, %369, %c3_276, %c0_277] : memref<1x44x11x8xbf16, #tpu.memory_space<vmem>>, vector<1x1x8x8xbf16>
    %371 = vector.shape_cast %370 : vector<1x1x8x8xbf16> to vector<1x8x8xbf16>
    %372 = vector.shape_cast %371 : vector<1x8x8xbf16> to vector<8x8xbf16>
    %c41 = arith.constant 41 : index
    %c0_278 = arith.constant 0 : index
    %c0_279 = arith.constant 0 : index
    %373 = vector.load %arg4[%c41, %c0_278, %c0_279] : memref<49x8x64xbf16, #tpu.memory_space<vmem>>, vector<1x8x64xbf16>
    %374 = vector.shape_cast %373 : vector<1x8x64xbf16> to vector<8x64xbf16>
    %cst_280 = arith.constant dense<0.000000e+00> : vector<8x64xf32>
    %375 = tpu.matmul %372, %374, %cst_280 {dimension_numbers = #tpu.dot_dimension_numbers<[1], [0], [0], [1], [0, 0, 1, 1], [], []>} : vector<8x8xbf16>, vector<8x64xbf16>, vector<8x64xf32> -> vector<8x64xf32>
    %376 = arith.addf %367, %375 : vector<8x64xf32>
    %c3_i32 = arith.constant 3 : i32
    %377 = arith.addi %c3_i32, %arg2 : i32
    %c0_281 = arith.constant 0 : index
    %378 = arith.index_cast %377 : i32 to index
    %c0_282 = arith.constant 0 : index
    %c0_283 = arith.constant 0 : index
    %379 = vector.load %arg3[%c0_281, %378, %c0_282, %c0_283] : memref<1x44x11x8xbf16, #tpu.memory_space<vmem>>, vector<1x1x8x8xbf16>
    %380 = vector.shape_cast %379 : vector<1x1x8x8xbf16> to vector<1x8x8xbf16>
    %381 = vector.shape_cast %380 : vector<1x8x8xbf16> to vector<8x8xbf16>
    %c42 = arith.constant 42 : index
    %c0_284 = arith.constant 0 : index
    %c0_285 = arith.constant 0 : index
    %382 = vector.load %arg4[%c42, %c0_284, %c0_285] : memref<49x8x64xbf16, #tpu.memory_space<vmem>>, vector<1x8x64xbf16>
    %383 = vector.shape_cast %382 : vector<1x8x64xbf16> to vector<8x64xbf16>
    %cst_286 = arith.constant dense<0.000000e+00> : vector<8x64xf32>
    %384 = tpu.matmul %381, %383, %cst_286 {dimension_numbers = #tpu.dot_dimension_numbers<[1], [0], [0], [1], [0, 0, 1, 1], [], []>} : vector<8x8xbf16>, vector<8x64xbf16>, vector<8x64xf32> -> vector<8x64xf32>
    %385 = arith.addf %376, %384 : vector<8x64xf32>
    %c14_i32 = arith.constant 14 : i32
    %386 = arith.addi %c14_i32, %arg2 : i32
    %c0_287 = arith.constant 0 : index
    %387 = arith.index_cast %386 : i32 to index
    %c0_288 = arith.constant 0 : index
    %c0_289 = arith.constant 0 : index
    %388 = vector.load %arg3[%c0_287, %387, %c0_288, %c0_289] : memref<1x44x11x8xbf16, #tpu.memory_space<vmem>>, vector<1x1x8x8xbf16>
    %389 = vector.shape_cast %388 : vector<1x1x8x8xbf16> to vector<1x8x8xbf16>
    %390 = vector.shape_cast %389 : vector<1x8x8xbf16> to vector<8x8xbf16>
    %c43 = arith.constant 43 : index
    %c0_290 = arith.constant 0 : index
    %c0_291 = arith.constant 0 : index
    %391 = vector.load %arg4[%c43, %c0_290, %c0_291] : memref<49x8x64xbf16, #tpu.memory_space<vmem>>, vector<1x8x64xbf16>
    %392 = vector.shape_cast %391 : vector<1x8x64xbf16> to vector<8x64xbf16>
    %cst_292 = arith.constant dense<0.000000e+00> : vector<8x64xf32>
    %393 = tpu.matmul %390, %392, %cst_292 {dimension_numbers = #tpu.dot_dimension_numbers<[1], [0], [0], [1], [0, 0, 1, 1], [], []>} : vector<8x8xbf16>, vector<8x64xbf16>, vector<8x64xf32> -> vector<8x64xf32>
    %394 = arith.addf %385, %393 : vector<8x64xf32>
    %c3_i32_293 = arith.constant 3 : i32
    %395 = arith.addi %c3_i32_293, %arg2 : i32
    %c0_294 = arith.constant 0 : index
    %396 = arith.index_cast %395 : i32 to index
    %c1_295 = arith.constant 1 : index
    %c0_296 = arith.constant 0 : index
    %397 = vector.load %arg3[%c0_294, %396, %c1_295, %c0_296] : memref<1x44x11x8xbf16, #tpu.memory_space<vmem>>, vector<1x1x8x8xbf16>
    %398 = vector.shape_cast %397 : vector<1x1x8x8xbf16> to vector<1x8x8xbf16>
    %399 = vector.shape_cast %398 : vector<1x8x8xbf16> to vector<8x8xbf16>
    %c44 = arith.constant 44 : index
    %c0_297 = arith.constant 0 : index
    %c0_298 = arith.constant 0 : index
    %400 = vector.load %arg4[%c44, %c0_297, %c0_298] : memref<49x8x64xbf16, #tpu.memory_space<vmem>>, vector<1x8x64xbf16>
    %401 = vector.shape_cast %400 : vector<1x8x64xbf16> to vector<8x64xbf16>
    %cst_299 = arith.constant dense<0.000000e+00> : vector<8x64xf32>
    %402 = tpu.matmul %399, %401, %cst_299 {dimension_numbers = #tpu.dot_dimension_numbers<[1], [0], [0], [1], [0, 0, 1, 1], [], []>} : vector<8x8xbf16>, vector<8x64xbf16>, vector<8x64xf32> -> vector<8x64xf32>
    %403 = arith.addf %394, %402 : vector<8x64xf32>
    %c14_i32_300 = arith.constant 14 : i32
    %404 = arith.addi %c14_i32_300, %arg2 : i32
    %c0_301 = arith.constant 0 : index
    %405 = arith.index_cast %404 : i32 to index
    %c1_302 = arith.constant 1 : index
    %c0_303 = arith.constant 0 : index
    %406 = vector.load %arg3[%c0_301, %405, %c1_302, %c0_303] : memref<1x44x11x8xbf16, #tpu.memory_space<vmem>>, vector<1x1x8x8xbf16>
    %407 = vector.shape_cast %406 : vector<1x1x8x8xbf16> to vector<1x8x8xbf16>
    %408 = vector.shape_cast %407 : vector<1x8x8xbf16> to vector<8x8xbf16>
    %c45 = arith.constant 45 : index
    %c0_304 = arith.constant 0 : index
    %c0_305 = arith.constant 0 : index
    %409 = vector.load %arg4[%c45, %c0_304, %c0_305] : memref<49x8x64xbf16, #tpu.memory_space<vmem>>, vector<1x8x64xbf16>
    %410 = vector.shape_cast %409 : vector<1x8x64xbf16> to vector<8x64xbf16>
    %cst_306 = arith.constant dense<0.000000e+00> : vector<8x64xf32>
    %411 = tpu.matmul %408, %410, %cst_306 {dimension_numbers = #tpu.dot_dimension_numbers<[1], [0], [0], [1], [0, 0, 1, 1], [], []>} : vector<8x8xbf16>, vector<8x64xbf16>, vector<8x64xf32> -> vector<8x64xf32>
    %412 = arith.addf %403, %411 : vector<8x64xf32>
    %c3_i32_307 = arith.constant 3 : i32
    %413 = arith.addi %c3_i32_307, %arg2 : i32
    %c0_308 = arith.constant 0 : index
    %414 = arith.index_cast %413 : i32 to index
    %c2_309 = arith.constant 2 : index
    %c0_310 = arith.constant 0 : index
    %415 = vector.load %arg3[%c0_308, %414, %c2_309, %c0_310] : memref<1x44x11x8xbf16, #tpu.memory_space<vmem>>, vector<1x1x8x8xbf16>
    %416 = vector.shape_cast %415 : vector<1x1x8x8xbf16> to vector<1x8x8xbf16>
    %417 = vector.shape_cast %416 : vector<1x8x8xbf16> to vector<8x8xbf16>
    %c46 = arith.constant 46 : index
    %c0_311 = arith.constant 0 : index
    %c0_312 = arith.constant 0 : index
    %418 = vector.load %arg4[%c46, %c0_311, %c0_312] : memref<49x8x64xbf16, #tpu.memory_space<vmem>>, vector<1x8x64xbf16>
    %419 = vector.shape_cast %418 : vector<1x8x64xbf16> to vector<8x64xbf16>
    %cst_313 = arith.constant dense<0.000000e+00> : vector<8x64xf32>
    %420 = tpu.matmul %417, %419, %cst_313 {dimension_numbers = #tpu.dot_dimension_numbers<[1], [0], [0], [1], [0, 0, 1, 1], [], []>} : vector<8x8xbf16>, vector<8x64xbf16>, vector<8x64xf32> -> vector<8x64xf32>
    %421 = arith.addf %412, %420 : vector<8x64xf32>
    %c14_i32_314 = arith.constant 14 : i32
    %422 = arith.addi %c14_i32_314, %arg2 : i32
    %c0_315 = arith.constant 0 : index
    %423 = arith.index_cast %422 : i32 to index
    %c2_316 = arith.constant 2 : index
    %c0_317 = arith.constant 0 : index
    %424 = vector.load %arg3[%c0_315, %423, %c2_316, %c0_317] : memref<1x44x11x8xbf16, #tpu.memory_space<vmem>>, vector<1x1x8x8xbf16>
    %425 = vector.shape_cast %424 : vector<1x1x8x8xbf16> to vector<1x8x8xbf16>
    %426 = vector.shape_cast %425 : vector<1x8x8xbf16> to vector<8x8xbf16>
    %c47 = arith.constant 47 : index
    %c0_318 = arith.constant 0 : index
    %c0_319 = arith.constant 0 : index
    %427 = vector.load %arg4[%c47, %c0_318, %c0_319] : memref<49x8x64xbf16, #tpu.memory_space<vmem>>, vector<1x8x64xbf16>
    %428 = vector.shape_cast %427 : vector<1x8x64xbf16> to vector<8x64xbf16>
    %cst_320 = arith.constant dense<0.000000e+00> : vector<8x64xf32>
    %429 = tpu.matmul %426, %428, %cst_320 {dimension_numbers = #tpu.dot_dimension_numbers<[1], [0], [0], [1], [0, 0, 1, 1], [], []>} : vector<8x8xbf16>, vector<8x64xbf16>, vector<8x64xf32> -> vector<8x64xf32>
    %430 = arith.addf %421, %429 : vector<8x64xf32>
    %c3_i32_321 = arith.constant 3 : i32
    %431 = arith.addi %c3_i32_321, %arg2 : i32
    %c0_322 = arith.constant 0 : index
    %432 = arith.index_cast %431 : i32 to index
    %c3_323 = arith.constant 3 : index
    %c0_324 = arith.constant 0 : index
    %433 = vector.load %arg3[%c0_322, %432, %c3_323, %c0_324] : memref<1x44x11x8xbf16, #tpu.memory_space<vmem>>, vector<1x1x8x8xbf16>
    %434 = vector.shape_cast %433 : vector<1x1x8x8xbf16> to vector<1x8x8xbf16>
    %435 = vector.shape_cast %434 : vector<1x8x8xbf16> to vector<8x8xbf16>
    %c48 = arith.constant 48 : index
    %c0_325 = arith.constant 0 : index
    %c0_326 = arith.constant 0 : index
    %436 = vector.load %arg4[%c48, %c0_325, %c0_326] : memref<49x8x64xbf16, #tpu.memory_space<vmem>>, vector<1x8x64xbf16>
    %437 = vector.shape_cast %436 : vector<1x8x64xbf16> to vector<8x64xbf16>
    %cst_327 = arith.constant dense<0.000000e+00> : vector<8x64xf32>
    %438 = tpu.matmul %435, %437, %cst_327 {dimension_numbers = #tpu.dot_dimension_numbers<[1], [0], [0], [1], [0, 0, 1, 1], [], []>} : vector<8x8xbf16>, vector<8x64xbf16>, vector<8x64xf32> -> vector<8x64xf32>
    %439 = arith.addf %430, %438 : vector<8x64xf32>
    %c0_328 = arith.constant 0 : index
    %c0_329 = arith.constant 0 : index
    %440 = vector.load %arg5[%c0_328, %c0_329] : memref<1x64xf32, #tpu.memory_space<vmem>>, vector<1x64xf32>
    %441 = vector.broadcast %440 : vector<1x64xf32> to vector<8x64xf32>
    %442 = arith.mulf %439, %441 : vector<8x64xf32>
    %c0_330 = arith.constant 0 : index
    %c0_331 = arith.constant 0 : index
    %443 = vector.load %arg6[%c0_330, %c0_331] : memref<1x64xf32, #tpu.memory_space<vmem>>, vector<1x64xf32>
    %444 = vector.broadcast %443 : vector<1x64xf32> to vector<8x64xf32>
    %445 = arith.addf %442, %444 : vector<8x64xf32>
    %cst_332 = arith.constant 0.000000e+00 : f32
    %446 = vector.broadcast %cst_332 : f32 to vector<8x64xf32>
    %447 = arith.maximumf %445, %446 : vector<8x64xf32>
    %448 = arith.truncf %447 : vector<8x64xf32> to vector<8x64xbf16>
    %c0_333 = arith.constant 0 : index
    %c0_334 = arith.constant 0 : index
    %c0_335 = arith.constant 0 : index
    %c0_336 = arith.constant 0 : index
    %449 = vector.load %arg7[%c0_333, %c0_334, %c0_335, %c0_336] : memref<1x1x8x64xbf16, #tpu.memory_space<vmem>>, vector<1x1x8x64xbf16>
    %450 = vector.shape_cast %449 : vector<1x1x8x64xbf16> to vector<8x64xbf16>
    %451 = vector.shape_cast %448 : vector<8x64xbf16> to vector<1x1x8x64xbf16>
    tpu.vector_store %arg7[%c0_333, %c0_334, %c0_335, %c0_336], %451 {strides = array<i32>} : memref<1x1x8x64xbf16, #tpu.memory_space<vmem>>, vector<1x1x8x64xbf16>,
    return
  }
  func.func @transform_0(%arg0: i32, %arg1: i32, %arg2: i32) -> (i32, i32, i32, i32) {
    %c0_i32 = arith.constant 0 : i32
    %c0_i32_0 = arith.constant 0 : i32
    %c0_i32_1 = arith.constant 0 : i32
    %c0_i32_2 = arith.constant 0 : i32
    return %arg0, %c0_i32, %c0_i32_0, %c0_i32_1 : i32, i32, i32, i32
  }
  func.func @transform_1(%arg0: i32, %arg1: i32, %arg2: i32) -> (i32, i32, i32) {
    %c0_i32 = arith.constant 0 : i32
    %c0_i32_0 = arith.constant 0 : i32
    %c0_i32_1 = arith.constant 0 : i32
    return %c0_i32, %c0_i32_0, %arg1 : i32, i32, i32
  }
  func.func @transform_2(%arg0: i32, %arg1: i32, %arg2: i32) -> (i32, i32) {
    %c0_i32 = arith.constant 0 : i32
    %c0_i32_0 = arith.constant 0 : i32
    return %c0_i32, %arg1 : i32, i32
  }
  func.func @transform_3(%arg0: i32, %arg1: i32, %arg2: i32) -> (i32, i32) {
    %c0_i32 = arith.constant 0 : i32
    %c0_i32_0 = arith.constant 0 : i32
    return %c0_i32, %arg1 : i32, i32
  }
  func.func @transform_4(%arg0: i32, %arg1: i32, %arg2: i32) -> (i32, i32, i32, i32) {
    %c0_i32 = arith.constant 0 : i32
    %c0_i32_0 = arith.constant 0 : i32
    return %arg0, %arg2, %c0_i32, %arg1 : i32, i32, i32, i32
  }
}

</mosaic_0001>

<llo_original>
// kernel: tpu_custom_call.1
$region0: #{tpu_custom_call.1}
  #allocation0 [shape = 'u32[]', space=smem, size = 0x4, offset = 0x4, fixed_abs, tag = 'smem constant byte address 0x4 - core index']
  #allocation1 [shape = 'u32[72,128]{1,0:T(1,128)}', space=vmem, size = 0x9000, scoped, tag = 'internal scratch']
  %s0 = inlined_call_operand.vmem [shape: bf16[2,44,11,8], index: 0, kind: input, shape index: {}]
  %s1 = inlined_call_operand.vmem [shape: bf16[49,8,64], index: 1, kind: input, shape index: {}]
  %s2 = inlined_call_operand.vmem [shape: f32[1,64], index: 2, kind: input, shape index: {}]
  %s3 = inlined_call_operand.vmem [shape: f32[1,64], index: 3, kind: input, shape index: {}]
  %s4 = inlined_call_operand.hbm [shape: bf16[2,8,8,64], index: 4, kind: output, shape index: {}]
  %s5 = sld [smem:[#allocation0]]
  $region49: #{tpu_custom_call.1} parent=0
    _
  %s7 = ssub.s32 1, %s5
  %s8 = scalar_select 0, %s7, %s5
  $region1: #{tpu_custom_call.1} parent=0
    #allocation2 [shape = 'u8[4096]{0}', space=vmem, size = 0x1000, scoped, tag = 'output window, operand 0']
    #allocation3 [shape = 's32[2]{0}', space=sflag, size = 0x8, scoped, tag = 'scoped memory for tpu_custom_call.1']
    %9 = vsyncpa [#allocation3], 0
    %s10 = scalar_lea.sflag [#allocation3], 1
    %11 = vsyncpa %s10, 0
    loop: start=0, step=1, limit=18
    $region2: #{tpu_custom_call.1} parent=1 // loop_pre_header
      _
    $region3: #{tpu_custom_call.1} parent=1 // loop_header
      %s13 = sphi 0, %s17
      %p14 = scmp.ge.s32.totalorder %s13, 18
      %s20 = sphi 0, %s39
      %s21 = sphi 0, %s35
      %s22 = sphi 0, %s31
      %s23 = sphi 0, %s20
      %s24 = sphi 0, %s21
      %s25 = sphi 0, %s22
      %s26 = sphi 0, %s23
      %s27 = sphi 0, %s24
      %s28 = sphi 0, %s25
      %s42 = sphi 0, %s44
      %s45 = sphi 0, %s42
      %s46 = sphi 0, %s45
      %s62 = sphi 0, %s46
      %s68 = sphi 0, %s70
      %s71 = sphi 0, %s68
      %s72 = sphi 0, %s71
      %s88 = sphi 0, %s72
      %s94 = sphi 0, %s96
      %s97 = sphi 0, %s94
      %s98 = sphi 0, %s97
      %s114 = sphi 0, %s98
      %s120 = sphi 0, %s122
      %s123 = sphi 0, %s120
      %s124 = sphi 0, %s123
      %s140 = sphi 0, %s124
      %s150 = sphi 0, %s152
      %s153 = sphi 0, %s150
      %s154 = sphi 0, %s153
      %s170 = sphi 0, %s154
    $region4: #{tpu_custom_call.1} parent=1 // loop_header_branch
      %16 = sbr.rel (%p14) target = $region8
    $region5: #{tpu_custom_call.1} parent=1 // loop_body
      %s18 = ssub.s32 %s13, 1
      %s19 = ssub.s32 %s13, 2
      %s29 = sadd.s32 1, %s22
      %p30 = scmp.ge.s32.totalorder %s29, 8
      %s31 = scalar_select %p30, 0, %s29
      %s32 = sadd.s32 1, %s21
      %s33 = scalar_select %p30, %s32, %s21
      %p34 = scmp.ge.s32.totalorder %s33, 1
      %s35 = scalar_select %p34, 0, %s33
      %s36 = sadd.s32 1, %s20
      %s37 = scalar_select %p34, %s36, %s20
      %p38 = scmp.ge.s32.totalorder %s37, 2
      %s39 = scalar_select %p38, 0, %s37
      %s40 = ssub.s32 %s20, %s39
      %p41 = scmp.eq.s32.totalorder %s40, 0
      %s43 = sadd.s32 %s42, 1
      %s44 = scalar_select %p41, %s42, %s43
      %p47 = pneg %p41
      %p48 = scmp.eq.s32.totalorder %s13, 15
      %p49 = por %p47, %p48
      %p50 = scmp.ne.s32.totalorder %s42, %s45
      %p51 = scmp.eq.s32.totalorder %s13, 0
      %p52 = por %p50, %p51
      %p53 = scmp.ne.s32.totalorder %s42, %s45
      %p54 = scmp.eq.s32.totalorder %s18, 15
      %p55 = por %p53, %p54
      %p56 = scmp.ne.s32.totalorder %s45, %s46
      %p57 = scmp.eq.s32.totalorder %s18, 0
      %p58 = por %p56, %p57
      %p59 = scmp.ne.s32.totalorder %s45, %s46
      %p60 = scmp.eq.s32.totalorder %s19, 15
      %p61 = por %p59, %p60
      %p63 = scmp.ne.s32.totalorder %s46, %s62
      %p64 = scmp.eq.s32.totalorder %s19, 0
      %p65 = por %p63, %p64
      %s66 = ssub.s32 %s21, %s35
      %p67 = scmp.eq.s32.totalorder %s66, 0
      %s69 = sadd.s32 %s68, 1
      %s70 = scalar_select %p67, %s68, %s69
      %p73 = pneg %p67
      %p74 = scmp.eq.s32.totalorder %s13, 15
      %p75 = por %p73, %p74
      %p76 = scmp.ne.s32.totalorder %s68, %s71
      %p77 = scmp.eq.s32.totalorder %s13, 0
      %p78 = por %p76, %p77
      %p79 = scmp.ne.s32.totalorder %s68, %s71
      %p80 = scmp.eq.s32.totalorder %s18, 15
      %p81 = por %p79, %p80
      %p82 = scmp.ne.s32.totalorder %s71, %s72
      %p83 = scmp.eq.s32.totalorder %s18, 0
      %p84 = por %p82, %p83
      %p85 = scmp.ne.s32.totalorder %s71, %s72
      %p86 = scmp.eq.s32.totalorder %s19, 15
      %p87 = por %p85, %p86
      %p89 = scmp.ne.s32.totalorder %s72, %s88
      %p90 = scmp.eq.s32.totalorder %s19, 0
      %p91 = por %p89, %p90
      %s92 = ssub.s32 %s21, %s35
      %p93 = scmp.eq.s32.totalorder %s92, 0
      %s95 = sadd.s32 %s94, 1
      %s96 = scalar_select %p93, %s94, %s95
      %p99 = pneg %p93
      %p100 = scmp.eq.s32.totalorder %s13, 15
      %p101 = por %p99, %p100
      %p102 = scmp.ne.s32.totalorder %s94, %s97
      %p103 = scmp.eq.s32.totalorder %s13, 0
      %p104 = por %p102, %p103
      %p105 = scmp.ne.s32.totalorder %s94, %s97
      %p106 = scmp.eq.s32.totalorder %s18, 15
      %p107 = por %p105, %p106
      %p108 = scmp.ne.s32.totalorder %s97, %s98
      %p109 = scmp.eq.s32.totalorder %s18, 0
      %p110 = por %p108, %p109
      %p111 = scmp.ne.s32.totalorder %s97, %s98
      %p112 = scmp.eq.s32.totalorder %s19, 15
      %p113 = por %p111, %p112
      %p115 = scmp.ne.s32.totalorder %s98, %s114
      %p116 = scmp.eq.s32.totalorder %s19, 0
      %p117 = por %p115, %p116
      %s118 = ssub.s32 %s21, %s35
      %p119 = scmp.eq.s32.totalorder %s118, 0
      %s121 = sadd.s32 %s120, 1
      %s122 = scalar_select %p119, %s120, %s121
      %p125 = pneg %p119
      %p126 = scmp.eq.s32.totalorder %s13, 15
      %p127 = por %p125, %p126
      %p128 = scmp.ne.s32.totalorder %s120, %s123
      %p129 = scmp.eq.s32.totalorder %s13, 0
      %p130 = por %p128, %p129
      %p131 = scmp.ne.s32.totalorder %s120, %s123
      %p132 = scmp.eq.s32.totalorder %s18, 15
      %p133 = por %p131, %p132
      %p134 = scmp.ne.s32.totalorder %s123, %s124
      %p135 = scmp.eq.s32.totalorder %s18, 0
      %p136 = por %p134, %p135
      %p137 = scmp.ne.s32.totalorder %s123, %s124
      %p138 = scmp.eq.s32.totalorder %s19, 15
      %p139 = por %p137, %p138
      %p141 = scmp.ne.s32.totalorder %s124, %s140
      %p142 = scmp.eq.s32.totalorder %s19, 0
      %p143 = por %p141, %p142
      %s144 = ssub.s32 %s20, %s39
      %s145 = ssub.s32 %s22, %s31
      %s146 = sor.u32 %s144, %s145
      %s147 = ssub.s32 %s21, %s35
      %s148 = sor.u32 %s146, %s147
      %p149 = scmp.eq.s32.totalorder %s148, 0
      %s151 = sadd.s32 %s150, 1
      %s152 = scalar_select %p149, %s150, %s151
      %p155 = pneg %p149
      %p156 = scmp.eq.s32.totalorder %s13, 15
      %p157 = por %p155, %p156
      %p158 = scmp.ne.s32.totalorder %s150, %s153
      %p159 = scmp.eq.s32.totalorder %s13, 0
      %p160 = por %p158, %p159
      %p161 = scmp.ne.s32.totalorder %s150, %s153
      %p162 = scmp.eq.s32.totalorder %s18, 15
      %p163 = por %p161, %p162
      %p164 = scmp.ne.s32.totalorder %s153, %s154
      %p165 = scmp.eq.s32.totalorder %s18, 0
      %p166 = por %p164, %p165
      %p167 = scmp.ne.s32.totalorder %s153, %s154
      %p168 = scmp.eq.s32.totalorder %s19, 15
      %p169 = por %p167, %p168
      %p171 = scmp.ne.s32.totalorder %s154, %s170
      %p172 = scmp.eq.s32.totalorder %s19, 0
      %p173 = por %p171, %p172
      %p174 = scmp.le.s32.totalorder 1, %s13
      %p175 = scmp.lt.s32.totalorder %s13, 17
      %p176 = pnand %p174, %p175
      %p177 = pneg %p176
      // Predicated region
      $region9: #{tpu_custom_call.1} parent=5 // pred_check
        _
      $region10: #{tpu_custom_call.1} parent=5 // pred_check_branch
        %179 = sbr.rel (%p176) target = $region12
      $region11: #{tpu_custom_call.1} parent=5 // pred_region
        %s180 = ssub.s32 %s13, 1
        // Predicated region
        $region13: #{tpu_custom_call.1} parent=11 // pred_check
          %p181 = pneg %p84
        $region14: #{tpu_custom_call.1} parent=11 // pred_check_branch
          %183 = sbr.rel (%p181) target = $region16
        $region15: #{tpu_custom_call.1} parent=11 // pred_region
          %p184 = scmp.lt.s32.totalorder %s24, 0
          %s185 = scalar_select %p184, %s24, 0
          %s186 = smul.addr %s185, 4
          %s187 = scalar_lea.vmem %s1, %s186
        $region16: #{tpu_custom_call.1} parent=11 // pred_fallthru
          _
        // Predicated region
        $region17: #{tpu_custom_call.1} parent=11 // pred_check
          %p188 = pneg %p110
        $region18: #{tpu_custom_call.1} parent=11 // pred_check_branch
          %190 = sbr.rel (%p188) target = $region20
        $region19: #{tpu_custom_call.1} parent=11 // pred_region
          %p191 = scmp.lt.s32.totalorder %s24, 0
          %s192 = scalar_select %p191, %s24, 0
          %s193 = scalar_lea.vmem %s2, %s192
        $region20: #{tpu_custom_call.1} parent=11 // pred_fallthru
          _
        // Predicated region
        $region21: #{tpu_custom_call.1} parent=11 // pred_check
          %p194 = pneg %p136
        $region22: #{tpu_custom_call.1} parent=11 // pred_check_branch
          %196 = sbr.rel (%p194) target = $region24
        $region23: #{tpu_custom_call.1} parent=11 // pred_region
          %p197 = scmp.lt.s32.totalorder %s24, 0
          %s198 = scalar_select %p197, %s24, 0
          %s199 = scalar_lea.vmem %s3, %s198
        $region24: #{tpu_custom_call.1} parent=11 // pred_fallthru
          _
      $region12: #{tpu_custom_call.1} parent=5 // pred_fallthru
        _
      %p200 = scmp.lt.s32.totalorder %s13, 16
      // Predicated region
      $region25: #{tpu_custom_call.1} parent=5 // pred_check
        %p201 = pneg %p200
      $region26: #{tpu_custom_call.1} parent=5 // pred_check_branch
        %203 = sbr.rel (%p201) target = $region28
      $region27: #{tpu_custom_call.1} parent=5 // pred_region
        // Predicated region
        $region29: #{tpu_custom_call.1} parent=27 // pred_check
          %p204 = pneg %p52
        $region30: #{tpu_custom_call.1} parent=27 // pred_check_branch
          %206 = sbr.rel (%p204) target = $region32
        $region31: #{tpu_custom_call.1} parent=27 // pred_region
          %p207 = scmp.lt.s32.totalorder %s20, 1
          %s208 = scalar_select %p207, %s20, 1
          %s209 = smul.addr %s208, 88
          %s210 = smul.addr %s209, 4
          %s211 = scalar_lea.vmem %s0, %s210
        $region32: #{tpu_custom_call.1} parent=27 // pred_fallthru
          _
      $region28: #{tpu_custom_call.1} parent=5 // pred_fallthru
        _
      %p212 = scmp.le.s32.totalorder 1, %s13
      %p213 = scmp.lt.s32.totalorder %s13, 17
      %p214 = pnand %p212, %p213
      %p215 = pneg %p214
      // Predicated region
      $region33: #{tpu_custom_call.1} parent=5 // pred_check
        _
      $region34: #{tpu_custom_call.1} parent=5 // pred_check_branch
        %217 = sbr.rel (%p214) target = $region36
      $region35: #{tpu_custom_call.1} parent=5 // pred_region
        %s218 = ssub.s32 %s13, 1
        %p219 = scmp.lt.s32.totalorder %s23, 1
        %s220 = scalar_select %p219, %s23, 1
        %s221 = smul.addr %s220, 88
        %s222 = smul.addr %s221, 4
        %s223 = scalar_lea.vmem %s0, %s222
        %p224 = pneg %p58
        %p225 = pneg %p55
        %p226 = scmp.lt.s32.totalorder %s24, 0
        %s227 = scalar_select %p226, %s24, 0
        %s228 = smul.addr %s227, 4
        %s229 = scalar_lea.vmem %s1, %s228
        %p230 = pneg %p84
        %p231 = pneg %p81
        %p232 = scmp.lt.s32.totalorder %s24, 0
        %s233 = scalar_select %p232, %s24, 0
        %s234 = scalar_lea.vmem %s2, %s233
        %p235 = pneg %p110
        %p236 = pneg %p107
        %p237 = scmp.lt.s32.totalorder %s24, 0
        %s238 = scalar_select %p237, %s24, 0
        %s239 = scalar_lea.vmem %s3, %s238
        %p240 = pneg %p136
        %p241 = pneg %p133
        %p242 = pneg %p166
        %p243 = pneg %p163
        %s244 = sand.u32 %s153, 1
        %s245 = scalar_lea.sflag [#allocation3], %s244
        %s246 = sand.u32 %s153, 1
        %s247 = smul.addr %s246, 4
        %s248 = scalar_lea.vmem [#allocation2], %s247
        %p249 = scmp.lt.s32.totalorder %s23, 1
        %s250 = scalar_select %p249, %s23, 1
        %s251 = smul.addr %s250, 88
        %s252 = smul.addr %s251, 4
        %s253 = scalar_lea.vmem %s0, %s252
        %p254 = scmp.lt.s32.totalorder %s24, 0
        %s255 = scalar_select %p254, %s24, 0
        %s256 = smul.addr %s255, 4
        %s257 = scalar_lea.vmem %s1, %s256
        %p258 = scmp.lt.s32.totalorder %s24, 0
        %s259 = scalar_select %p258, %s24, 0
        %s260 = scalar_lea.vmem %s2, %s259
        %p261 = scmp.lt.s32.totalorder %s24, 0
        %s262 = scalar_select %p261, %s24, 0
        %s263 = scalar_lea.vmem %s3, %s262
        %s265 = smul.u32 %s25, 2
        %s266 = smul.addr %s265, 4
        %s267 = scalar_lea.vmem %s253, %s266
        %v268 = vld [vmem:[%s267] sm:$0xf]
        %v269 = vld [vmem:[%s257] sm:$0xf]
        %s270 = sadd.s32 %s25, 11
        %s271 = smul.u32 %s270, 2
        %s272 = smul.addr %s271, 4
        %s273 = scalar_lea.vmem %s253, %s272
        %v274 = vld [vmem:[%s273] sm:$0xf]
        %s275 = scalar_lea.vmem %s257, 4
        %v276 = vld [vmem:[%s275] sm:$0xf]
        %vm277 = vcmask 64512
        %v279 = vsel %vm277, %v274, 0
        %vm281 = vcmask 1043456
        %v283 = vsel %vm281, %v276, 0
        %285 = vmatpush.bf16.msra.mxu0 0
        %286 = vmatpush.bf16.msra.mxu0 0
        %287 = vmatpush.bf16.msra.mxu0 0
        %288 = vmatpush.bf16.msra.mxu0 0
        %289 = vmatpush.bf16.msra.mxu0 0
        %290 = vmatpush.bf16.msra.mxu0 0
        %291 = vmatpush.bf16.msra.mxu0 0
        %292 = vmatpush.bf16.msra.mxu0 %v283
        %293 = vmatmul.bf16.gmra.mxu0 %v279
        %v294 = vpop.f32.mrf.mxu0
        %v295 = vadd.f32 0.0, %v294
        %v296 = vpop.f32.mrf.mxu0
        %297 = vdwg.mxu0
        %v299 = vsel %vm277, %v268, 0
        %v302 = vsel %vm281, %v269, 0
        %304 = vmatpush.bf16.msra.mxu0 0
        %305 = vmatpush.bf16.msra.mxu0 0
        %306 = vmatpush.bf16.msra.mxu0 0
        %307 = vmatpush.bf16.msra.mxu0 0
        %308 = vmatpush.bf16.msra.mxu0 0
        %309 = vmatpush.bf16.msra.mxu0 0
        %310 = vmatpush.bf16.msra.mxu0 0
        %311 = vmatpush.bf16.msra.mxu0 %v302
        %312 = vmatmul.bf16.gmra.mxu0 %v299
        %v313 = vpop.f32.mrf.mxu0
        %v314 = vadd.f32 %v295, %v313
        %v315 = vpop.f32.mrf.mxu0
        %316 = vdwg.mxu0
        %v317 = vld [vmem:[%s267] sm:$0xf]
        %v318 = vld [vmem:[%s267 + $0x4] sm:$0x1]
        %s319 = scalar_lea.vmem %s257, 8
        %v320 = vld [vmem:[%s319] sm:$0xf]
        %v323 = vunpack.c.l.b16 %v317
        %v324 = vunpack.c.l.b16 %v318
        %v325 = vpack.c.b16 %v324, %v323
        %v327 = vshrl.u32 %v325, 16
        %v329 = vshll.u32 %v325, 16
        %v331 = vrot.slane %v329, 1
        %v332 = vor.u32 %v327, %v331
        %v334 = vsel %vm277, %v332, 0
        %v337 = vsel %vm281, %v320, 0
        %339 = vmatpush.bf16.msra.mxu0 0
        %340 = vmatpush.bf16.msra.mxu0 0
        %341 = vmatpush.bf16.msra.mxu0 0
        %342 = vmatpush.bf16.msra.mxu0 0
        %343 = vmatpush.bf16.msra.mxu0 0
        %344 = vmatpush.bf16.msra.mxu0 0
        %345 = vmatpush.bf16.msra.mxu0 0
        %346 = vmatpush.bf16.msra.mxu0 %v337
        %347 = vmatmul.bf16.gmra.mxu0 %v334
        %v348 = vpop.f32.mrf.mxu0
        %v349 = vadd.f32 0.0, %v348
        %v350 = vpop.f32.mrf.mxu0
        %351 = vdwg.mxu0
        %v352 = vadd.f32 %v314, %v349
        %v353 = vld [vmem:[%s273] sm:$0xf]
        %v354 = vld [vmem:[%s273 + $0x4] sm:$0x1]
        %s355 = scalar_lea.vmem %s257, 12
        %v356 = vld [vmem:[%s355] sm:$0xf]
        %v359 = vunpack.c.l.b16 %v353
        %v360 = vunpack.c.l.b16 %v354
        %v361 = vpack.c.b16 %v360, %v359
        %v363 = vshrl.u32 %v361, 16
        %v365 = vshll.u32 %v361, 16
        %v367 = vrot.slane %v365, 1
        %v368 = vor.u32 %v363, %v367
        %v370 = vsel %vm277, %v368, 0
        %v373 = vsel %vm281, %v356, 0
        %375 = vmatpush.bf16.msra.mxu0 0
        %376 = vmatpush.bf16.msra.mxu0 0
        %377 = vmatpush.bf16.msra.mxu0 0
        %378 = vmatpush.bf16.msra.mxu0 0
        %379 = vmatpush.bf16.msra.mxu0 0
        %380 = vmatpush.bf16.msra.mxu0 0
        %381 = vmatpush.bf16.msra.mxu0 0
        %382 = vmatpush.bf16.msra.mxu0 %v373
        %383 = vmatmul.bf16.gmra.mxu0 %v370
        %v384 = vpop.f32.mrf.mxu0
        %v385 = vadd.f32 0.0, %v384
        %v386 = vpop.f32.mrf.mxu0
        %387 = vdwg.mxu0
        %v388 = vadd.f32 %v352, %v385
        %v389 = vld [vmem:[%s267] sm:$0xe]
        %s390 = scalar_lea.vmem %s257, 16
        %v391 = vld [vmem:[%s390] sm:$0xf]
        %v393 = vunpack.c.l.b16 %v389
        %v394 = vpack.c.b16 %v324, %v393
        %v395 = vrot.slane %v394, 1
        %v397 = vsel %vm277, %v395, 0
        %v400 = vsel %vm281, %v391, 0
        %402 = vmatpush.bf16.msra.mxu0 0
        %403 = vmatpush.bf16.msra.mxu0 0
        %404 = vmatpush.bf16.msra.mxu0 0
        %405 = vmatpush.bf16.msra.mxu0 0
        %406 = vmatpush.bf16.msra.mxu0 0
        %407 = vmatpush.bf16.msra.mxu0 0
        %408 = vmatpush.bf16.msra.mxu0 0
        %409 = vmatpush.bf16.msra.mxu0 %v400
        %410 = vmatmul.bf16.gmra.mxu0 %v397
        %v411 = vpop.f32.mrf.mxu0
        %v412 = vadd.f32 0.0, %v411
        %v413 = vpop.f32.mrf.mxu0
        %414 = vdwg.mxu0
        %v415 = vadd.f32 %v388, %v412
        %v416 = vld [vmem:[%s273] sm:$0xe]
        %s417 = scalar_lea.vmem %s257, 20
        %v418 = vld [vmem:[%s417] sm:$0xf]
        %v420 = vunpack.c.l.b16 %v416
        %v421 = vpack.c.b16 %v360, %v420
        %v422 = vrot.slane %v421, 1
        %v424 = vsel %vm277, %v422, 0
        %v427 = vsel %vm281, %v418, 0
        %429 = vmatpush.bf16.msra.mxu0 0
        %430 = vmatpush.bf16.msra.mxu0 0
        %431 = vmatpush.bf16.msra.mxu0 0
        %432 = vmatpush.bf16.msra.mxu0 0
        %433 = vmatpush.bf16.msra.mxu0 0
        %434 = vmatpush.bf16.msra.mxu0 0
        %435 = vmatpush.bf16.msra.mxu0 0
        %436 = vmatpush.bf16.msra.mxu0 %v427
        %437 = vmatmul.bf16.gmra.mxu0 %v424
        %v438 = vpop.f32.mrf.mxu0
        %v439 = vadd.f32 0.0, %v438
        %v440 = vpop.f32.mrf.mxu0
        %441 = vdwg.mxu0
        %v442 = vadd.f32 %v415, %v439
        %v443 = vld [vmem:[%s267 + $0x4] sm:$0x3]
        %s444 = scalar_lea.vmem %s257, 24
        %v445 = vld [vmem:[%s444] sm:$0xf]
        %v447 = vunpack.c.l.b16 %v443
        %v448 = vpack.c.b16 %v447, %v393
        %v450 = vshrl.u32 %v448, 16
        %v452 = vrot.slane %v450, 1
        %v453 = vshll.u32 %v448, 16
        %v455 = vrot.slane %v453, 2
        %v456 = vor.u32 %v452, %v455
        %v458 = vsel %vm277, %v456, 0
        %v461 = vsel %vm281, %v445, 0
        %463 = vmatpush.bf16.msra.mxu0 0
        %464 = vmatpush.bf16.msra.mxu0 0
        %465 = vmatpush.bf16.msra.mxu0 0
        %466 = vmatpush.bf16.msra.mxu0 0
        %467 = vmatpush.bf16.msra.mxu0 0
        %468 = vmatpush.bf16.msra.mxu0 0
        %469 = vmatpush.bf16.msra.mxu0 0
        %470 = vmatpush.bf16.msra.mxu0 %v461
        %471 = vmatmul.bf16.gmra.mxu0 %v458
        %v472 = vpop.f32.mrf.mxu0
        %v473 = vadd.f32 0.0, %v472
        %v474 = vpop.f32.mrf.mxu0
        %475 = vdwg.mxu0
        %v476 = vadd.f32 %v442, %v473
        %s477 = sadd.s32 %s25, 22
        %s478 = smul.u32 %s477, 2
        %s479 = smul.addr %s478, 4
        %s480 = scalar_lea.vmem %s253, %s479
        %v481 = vld [vmem:[%s480] sm:$0xf]
        %s482 = scalar_lea.vmem %s257, 28
        %v483 = vld [vmem:[%s482] sm:$0xf]
        %v485 = vsel %vm277, %v481, 0
        %v488 = vsel %vm281, %v483, 0
        %490 = vmatpush.bf16.msra.mxu0 0
        %491 = vmatpush.bf16.msra.mxu0 0
        %492 = vmatpush.bf16.msra.mxu0 0
        %493 = vmatpush.bf16.msra.mxu0 0
        %494 = vmatpush.bf16.msra.mxu0 0
        %495 = vmatpush.bf16.msra.mxu0 0
        %496 = vmatpush.bf16.msra.mxu0 0
        %497 = vmatpush.bf16.msra.mxu0 %v488
        %498 = vmatmul.bf16.gmra.mxu0 %v485
        %v499 = vpop.f32.mrf.mxu0
        %v500 = vadd.f32 0.0, %v499
        %v501 = vpop.f32.mrf.mxu0
        %502 = vdwg.mxu0
        %v503 = vadd.f32 %v476, %v500
        %s504 = sadd.s32 %s25, 33
        %s505 = smul.u32 %s504, 2
        %s506 = smul.addr %s505, 4
        %s507 = scalar_lea.vmem %s253, %s506
        %v508 = vld [vmem:[%s507] sm:$0xf]
        %s509 = scalar_lea.vmem %s257, 32
        %v510 = vld [vmem:[%s509] sm:$0xf]
        %v512 = vsel %vm277, %v508, 0
        %v515 = vsel %vm281, %v510, 0
        %517 = vmatpush.bf16.msra.mxu0 0
        %518 = vmatpush.bf16.msra.mxu0 0
        %519 = vmatpush.bf16.msra.mxu0 0
        %520 = vmatpush.bf16.msra.mxu0 0
        %521 = vmatpush.bf16.msra.mxu0 0
        %522 = vmatpush.bf16.msra.mxu0 0
        %523 = vmatpush.bf16.msra.mxu0 0
        %524 = vmatpush.bf16.msra.mxu0 %v515
        %525 = vmatmul.bf16.gmra.mxu0 %v512
        %v526 = vpop.f32.mrf.mxu0
        %v527 = vadd.f32 0.0, %v526
        %v528 = vpop.f32.mrf.mxu0
        %529 = vdwg.mxu0
        %v530 = vadd.f32 %v503, %v527
        %v531 = vld [vmem:[%s480] sm:$0xf]
        %v532 = vld [vmem:[%s480 + $0x4] sm:$0x1]
        %s533 = scalar_lea.vmem %s257, 36
        %v534 = vld [vmem:[%s533] sm:$0xf]
        %v537 = vunpack.c.l.b16 %v531
        %v538 = vunpack.c.l.b16 %v532
        %v539 = vpack.c.b16 %v538, %v537
        %v541 = vshrl.u32 %v539, 16
        %v543 = vshll.u32 %v539, 16
        %v545 = vrot.slane %v543, 1
        %v546 = vor.u32 %v541, %v545
        %v548 = vsel %vm277, %v546, 0
        %v551 = vsel %vm281, %v534, 0
        %553 = vmatpush.bf16.msra.mxu0 0
        %554 = vmatpush.bf16.msra.mxu0 0
        %555 = vmatpush.bf16.msra.mxu0 0
        %556 = vmatpush.bf16.msra.mxu0 0
        %557 = vmatpush.bf16.msra.mxu0 0
        %558 = vmatpush.bf16.msra.mxu0 0
        %559 = vmatpush.bf16.msra.mxu0 0
        %560 = vmatpush.bf16.msra.mxu0 %v551
        %561 = vmatmul.bf16.gmra.mxu0 %v548
        %v562 = vpop.f32.mrf.mxu0
        %v563 = vadd.f32 0.0, %v562
        %v564 = vpop.f32.mrf.mxu0
        %565 = vdwg.mxu0
        %v566 = vadd.f32 %v530, %v563
        %v567 = vld [vmem:[%s507] sm:$0xf]
        %v568 = vld [vmem:[%s507 + $0x4] sm:$0x1]
        %s569 = scalar_lea.vmem %s257, 40
        %v570 = vld [vmem:[%s569] sm:$0xf]
        %v573 = vunpack.c.l.b16 %v567
        %v574 = vunpack.c.l.b16 %v568
        %v575 = vpack.c.b16 %v574, %v573
        %v577 = vshrl.u32 %v575, 16
        %v579 = vshll.u32 %v575, 16
        %v581 = vrot.slane %v579, 1
        %v582 = vor.u32 %v577, %v581
        %v584 = vsel %vm277, %v582, 0
        %v587 = vsel %vm281, %v570, 0
        %589 = vmatpush.bf16.msra.mxu0 0
        %590 = vmatpush.bf16.msra.mxu0 0
        %591 = vmatpush.bf16.msra.mxu0 0
        %592 = vmatpush.bf16.msra.mxu0 0
        %593 = vmatpush.bf16.msra.mxu0 0
        %594 = vmatpush.bf16.msra.mxu0 0
        %595 = vmatpush.bf16.msra.mxu0 0
        %596 = vmatpush.bf16.msra.mxu0 %v587
        %597 = vmatmul.bf16.gmra.mxu0 %v584
        %v598 = vpop.f32.mrf.mxu0
        %v599 = vadd.f32 0.0, %v598
        %v600 = vpop.f32.mrf.mxu0
        %601 = vdwg.mxu0
        %v602 = vadd.f32 %v566, %v599
        %v603 = vld [vmem:[%s480] sm:$0xe]
        %s604 = scalar_lea.vmem %s257, 44
        %v605 = vld [vmem:[%s604] sm:$0xf]
        %v607 = vunpack.c.l.b16 %v603
        %v608 = vpack.c.b16 %v538, %v607
        %v609 = vrot.slane %v608, 1
        %v611 = vsel %vm277, %v609, 0
        %v614 = vsel %vm281, %v605, 0
        %616 = vmatpush.bf16.msra.mxu0 0
        %617 = vmatpush.bf16.msra.mxu0 0
        %618 = vmatpush.bf16.msra.mxu0 0
        %619 = vmatpush.bf16.msra.mxu0 0
        %620 = vmatpush.bf16.msra.mxu0 0
        %621 = vmatpush.bf16.msra.mxu0 0
        %622 = vmatpush.bf16.msra.mxu0 0
        %623 = vmatpush.bf16.msra.mxu0 %v614
        %624 = vmatmul.bf16.gmra.mxu0 %v611
        %v625 = vpop.f32.mrf.mxu0
        %v626 = vadd.f32 0.0, %v625
        %v627 = vpop.f32.mrf.mxu0
        %628 = vdwg.mxu0
        %v629 = vadd.f32 %v602, %v626
        %v630 = vld [vmem:[%s507] sm:$0xe]
        %s631 = scalar_lea.vmem %s257, 48
        %v632 = vld [vmem:[%s631] sm:$0xf]
        %v634 = vunpack.c.l.b16 %v630
        %v635 = vpack.c.b16 %v574, %v634
        %v636 = vrot.slane %v635, 1
        %v638 = vsel %vm277, %v636, 0
        %v641 = vsel %vm281, %v632, 0
        %643 = vmatpush.bf16.msra.mxu0 0
        %644 = vmatpush.bf16.msra.mxu0 0
        %645 = vmatpush.bf16.msra.mxu0 0
        %646 = vmatpush.bf16.msra.mxu0 0
        %647 = vmatpush.bf16.msra.mxu0 0
        %648 = vmatpush.bf16.msra.mxu0 0
        %649 = vmatpush.bf16.msra.mxu0 0
        %650 = vmatpush.bf16.msra.mxu0 %v641
        %651 = vmatmul.bf16.gmra.mxu0 %v638
        %v652 = vpop.f32.mrf.mxu0
        %v653 = vadd.f32 0.0, %v652
        %v654 = vpop.f32.mrf.mxu0
        %655 = vdwg.mxu0
        %v656 = vadd.f32 %v629, %v653
        %v657 = vld [vmem:[%s480 + $0x4] sm:$0x3]
        %s658 = scalar_lea.vmem %s257, 52
        %v659 = vld [vmem:[%s658] sm:$0xf]
        %v661 = vunpack.c.l.b16 %v657
        %v662 = vpack.c.b16 %v661, %v607
        %v664 = vshrl.u32 %v662, 16
        %v666 = vrot.slane %v664, 1
        %v667 = vshll.u32 %v662, 16
        %v669 = vrot.slane %v667, 2
        %v670 = vor.u32 %v666, %v669
        %v672 = vsel %vm277, %v670, 0
        %v675 = vsel %vm281, %v659, 0
        %677 = vmatpush.bf16.msra.mxu0 0
        %678 = vmatpush.bf16.msra.mxu0 0
        %679 = vmatpush.bf16.msra.mxu0 0
        %680 = vmatpush.bf16.msra.mxu0 0
        %681 = vmatpush.bf16.msra.mxu0 0
        %682 = vmatpush.bf16.msra.mxu0 0
        %683 = vmatpush.bf16.msra.mxu0 0
        %684 = vmatpush.bf16.msra.mxu0 %v675
        %685 = vmatmul.bf16.gmra.mxu0 %v672
        %v686 = vpop.f32.mrf.mxu0
        %v687 = vadd.f32 0.0, %v686
        %v688 = vpop.f32.mrf.mxu0
        %689 = vdwg.mxu0
        %v690 = vadd.f32 %v656, %v687
        %s691 = sadd.s32 %s25, 1
        %s692 = smul.u32 %s691, 2
        %s693 = smul.addr %s692, 4
        %s694 = scalar_lea.vmem %s253, %s693
        %v695 = vld [vmem:[%s694] sm:$0xf]
        %s696 = scalar_lea.vmem %s257, 56
        %v697 = vld [vmem:[%s696] sm:$0xf]
        %v699 = vsel %vm277, %v695, 0
        %v702 = vsel %vm281, %v697, 0
        %704 = vmatpush.bf16.msra.mxu0 0
        %705 = vmatpush.bf16.msra.mxu0 0
        %706 = vmatpush.bf16.msra.mxu0 0
        %707 = vmatpush.bf16.msra.mxu0 0
        %708 = vmatpush.bf16.msra.mxu0 0
        %709 = vmatpush.bf16.msra.mxu0 0
        %710 = vmatpush.bf16.msra.mxu0 0
        %711 = vmatpush.bf16.msra.mxu0 %v702
        %712 = vmatmul.bf16.gmra.mxu0 %v699
        %v713 = vpop.f32.mrf.mxu0
        %v714 = vadd.f32 0.0, %v713
        %v715 = vpop.f32.mrf.mxu0
        %716 = vdwg.mxu0
        %v717 = vadd.f32 %v690, %v714
        %s718 = sadd.s32 %s25, 12
        %s719 = smul.u32 %s718, 2
        %s720 = smul.addr %s719, 4
        %s721 = scalar_lea.vmem %s253, %s720
        %v722 = vld [vmem:[%s721] sm:$0xf]
        %s723 = scalar_lea.vmem %s257, 60
        %v724 = vld [vmem:[%s723] sm:$0xf]
        %v726 = vsel %vm277, %v722, 0
        %v729 = vsel %vm281, %v724, 0
        %731 = vmatpush.bf16.msra.mxu0 0
        %732 = vmatpush.bf16.msra.mxu0 0
        %733 = vmatpush.bf16.msra.mxu0 0
        %734 = vmatpush.bf16.msra.mxu0 0
        %735 = vmatpush.bf16.msra.mxu0 0
        %736 = vmatpush.bf16.msra.mxu0 0
        %737 = vmatpush.bf16.msra.mxu0 0
        %738 = vmatpush.bf16.msra.mxu0 %v729
        %739 = vmatmul.bf16.gmra.mxu0 %v726
        %v740 = vpop.f32.mrf.mxu0
        %v741 = vadd.f32 0.0, %v740
        %v742 = vpop.f32.mrf.mxu0
        %743 = vdwg.mxu0
        %v744 = vadd.f32 %v717, %v741
        %v745 = vld [vmem:[%s694] sm:$0xf]
        %v746 = vld [vmem:[%s694 + $0x4] sm:$0x1]
        %s747 = scalar_lea.vmem %s257, 64
        %v748 = vld [vmem:[%s747] sm:$0xf]
        %v751 = vunpack.c.l.b16 %v745
        %v752 = vunpack.c.l.b16 %v746
        %v753 = vpack.c.b16 %v752, %v751
        %v755 = vshrl.u32 %v753, 16
        %v757 = vshll.u32 %v753, 16
        %v759 = vrot.slane %v757, 1
        %v760 = vor.u32 %v755, %v759
        %v762 = vsel %vm277, %v760, 0
        %v765 = vsel %vm281, %v748, 0
        %767 = vmatpush.bf16.msra.mxu0 0
        %768 = vmatpush.bf16.msra.mxu0 0
        %769 = vmatpush.bf16.msra.mxu0 0
        %770 = vmatpush.bf16.msra.mxu0 0
        %771 = vmatpush.bf16.msra.mxu0 0
        %772 = vmatpush.bf16.msra.mxu0 0
        %773 = vmatpush.bf16.msra.mxu0 0
        %774 = vmatpush.bf16.msra.mxu0 %v765
        %775 = vmatmul.bf16.gmra.mxu0 %v762
        %v776 = vpop.f32.mrf.mxu0
        %v777 = vadd.f32 0.0, %v776
        %v778 = vpop.f32.mrf.mxu0
        %779 = vdwg.mxu0
        %v780 = vadd.f32 %v744, %v777
        %v781 = vld [vmem:[%s721] sm:$0xf]
        %v782 = vld [vmem:[%s721 + $0x4] sm:$0x1]
        %s783 = scalar_lea.vmem %s257, 68
        %v784 = vld [vmem:[%s783] sm:$0xf]
        %v787 = vunpack.c.l.b16 %v781
        %v788 = vunpack.c.l.b16 %v782
        %v789 = vpack.c.b16 %v788, %v787
        %v791 = vshrl.u32 %v789, 16
        %v793 = vshll.u32 %v789, 16
        %v795 = vrot.slane %v793, 1
        %v796 = vor.u32 %v791, %v795
        %v798 = vsel %vm277, %v796, 0
        %v801 = vsel %vm281, %v784, 0
        %803 = vmatpush.bf16.msra.mxu0 0
        %804 = vmatpush.bf16.msra.mxu0 0
        %805 = vmatpush.bf16.msra.mxu0 0
        %806 = vmatpush.bf16.msra.mxu0 0
        %807 = vmatpush.bf16.msra.mxu0 0
        %808 = vmatpush.bf16.msra.mxu0 0
        %809 = vmatpush.bf16.msra.mxu0 0
        %810 = vmatpush.bf16.msra.mxu0 %v801
        %811 = vmatmul.bf16.gmra.mxu0 %v798
        %v812 = vpop.f32.mrf.mxu0
        %v813 = vadd.f32 0.0, %v812
        %v814 = vpop.f32.mrf.mxu0
        %815 = vdwg.mxu0
        %v816 = vadd.f32 %v780, %v813
        %v817 = vld [vmem:[%s694] sm:$0xe]
        %s818 = scalar_lea.vmem %s257, 72
        %v819 = vld [vmem:[%s818] sm:$0xf]
        %v821 = vunpack.c.l.b16 %v817
        %v822 = vpack.c.b16 %v752, %v821
        %v823 = vrot.slane %v822, 1
        %v825 = vsel %vm277, %v823, 0
        %v828 = vsel %vm281, %v819, 0
        %830 = vmatpush.bf16.msra.mxu0 0
        %831 = vmatpush.bf16.msra.mxu0 0
        %832 = vmatpush.bf16.msra.mxu0 0
        %833 = vmatpush.bf16.msra.mxu0 0
        %834 = vmatpush.bf16.msra.mxu0 0
        %835 = vmatpush.bf16.msra.mxu0 0
        %836 = vmatpush.bf16.msra.mxu0 0
        %837 = vmatpush.bf16.msra.mxu0 %v828
        %838 = vmatmul.bf16.gmra.mxu0 %v825
        %v839 = vpop.f32.mrf.mxu0
        %v840 = vadd.f32 0.0, %v839
        %v841 = vpop.f32.mrf.mxu0
        %842 = vdwg.mxu0
        %v843 = vadd.f32 %v816, %v840
        %v844 = vld [vmem:[%s721] sm:$0xe]
        %s845 = scalar_lea.vmem %s257, 76
        %v846 = vld [vmem:[%s845] sm:$0xf]
        %v848 = vunpack.c.l.b16 %v844
        %v849 = vpack.c.b16 %v788, %v848
        %v850 = vrot.slane %v849, 1
        %v852 = vsel %vm277, %v850, 0
        %v855 = vsel %vm281, %v846, 0
        %857 = vmatpush.bf16.msra.mxu0 0
        %858 = vmatpush.bf16.msra.mxu0 0
        %859 = vmatpush.bf16.msra.mxu0 0
        %860 = vmatpush.bf16.msra.mxu0 0
        %861 = vmatpush.bf16.msra.mxu0 0
        %862 = vmatpush.bf16.msra.mxu0 0
        %863 = vmatpush.bf16.msra.mxu0 0
        %864 = vmatpush.bf16.msra.mxu0 %v855
        %865 = vmatmul.bf16.gmra.mxu0 %v852
        %v866 = vpop.f32.mrf.mxu0
        %v867 = vadd.f32 0.0, %v866
        %v868 = vpop.f32.mrf.mxu0
        %869 = vdwg.mxu0
        %v870 = vadd.f32 %v843, %v867
        %v871 = vld [vmem:[%s694 + $0x4] sm:$0x3]
        %s872 = scalar_lea.vmem %s257, 80
        %v873 = vld [vmem:[%s872] sm:$0xf]
        %v875 = vunpack.c.l.b16 %v871
        %v876 = vpack.c.b16 %v875, %v821
        %v878 = vshrl.u32 %v876, 16
        %v880 = vrot.slane %v878, 1
        %v881 = vshll.u32 %v876, 16
        %v883 = vrot.slane %v881, 2
        %v884 = vor.u32 %v880, %v883
        %v886 = vsel %vm277, %v884, 0
        %v889 = vsel %vm281, %v873, 0
        %891 = vmatpush.bf16.msra.mxu0 0
        %892 = vmatpush.bf16.msra.mxu0 0
        %893 = vmatpush.bf16.msra.mxu0 0
        %894 = vmatpush.bf16.msra.mxu0 0
        %895 = vmatpush.bf16.msra.mxu0 0
        %896 = vmatpush.bf16.msra.mxu0 0
        %897 = vmatpush.bf16.msra.mxu0 0
        %898 = vmatpush.bf16.msra.mxu0 %v889
        %899 = vmatmul.bf16.gmra.mxu0 %v886
        %v900 = vpop.f32.mrf.mxu0
        %v901 = vadd.f32 0.0, %v900
        %v902 = vpop.f32.mrf.mxu0
        %903 = vdwg.mxu0
        %v904 = vadd.f32 %v870, %v901
        %s905 = sadd.s32 %s25, 23
        %s906 = smul.u32 %s905, 2
        %s907 = smul.addr %s906, 4
        %s908 = scalar_lea.vmem %s253, %s907
        %v909 = vld [vmem:[%s908] sm:$0xf]
        %s910 = scalar_lea.vmem %s257, 84
        %v911 = vld [vmem:[%s910] sm:$0xf]
        %v913 = vsel %vm277, %v909, 0
        %v916 = vsel %vm281, %v911, 0
        %918 = vmatpush.bf16.msra.mxu0 0
        %919 = vmatpush.bf16.msra.mxu0 0
        %920 = vmatpush.bf16.msra.mxu0 0
        %921 = vmatpush.bf16.msra.mxu0 0
        %922 = vmatpush.bf16.msra.mxu0 0
        %923 = vmatpush.bf16.msra.mxu0 0
        %924 = vmatpush.bf16.msra.mxu0 0
        %925 = vmatpush.bf16.msra.mxu0 %v916
        %926 = vmatmul.bf16.gmra.mxu0 %v913
        %v927 = vpop.f32.mrf.mxu0
        %v928 = vadd.f32 0.0, %v927
        %v929 = vpop.f32.mrf.mxu0
        %930 = vdwg.mxu0
        %v931 = vadd.f32 %v904, %v928
        %s932 = sadd.s32 %s25, 34
        %s933 = smul.u32 %s932, 2
        %s934 = smul.addr %s933, 4
        %s935 = scalar_lea.vmem %s253, %s934
        %v936 = vld [vmem:[%s935] sm:$0xf]
        %s937 = scalar_lea.vmem %s257, 88
        %v938 = vld [vmem:[%s937] sm:$0xf]
        %v940 = vsel %vm277, %v936, 0
        %v943 = vsel %vm281, %v938, 0
        %945 = vmatpush.bf16.msra.mxu0 0
        %946 = vmatpush.bf16.msra.mxu0 0
        %947 = vmatpush.bf16.msra.mxu0 0
        %948 = vmatpush.bf16.msra.mxu0 0
        %949 = vmatpush.bf16.msra.mxu0 0
        %950 = vmatpush.bf16.msra.mxu0 0
        %951 = vmatpush.bf16.msra.mxu0 0
        %952 = vmatpush.bf16.msra.mxu0 %v943
        %953 = vmatmul.bf16.gmra.mxu0 %v940
        %v954 = vpop.f32.mrf.mxu0
        %v955 = vadd.f32 0.0, %v954
        %v956 = vpop.f32.mrf.mxu0
        %957 = vdwg.mxu0
        %v958 = vadd.f32 %v931, %v955
        %v959 = vld [vmem:[%s908] sm:$0xf]
        %v960 = vld [vmem:[%s908 + $0x4] sm:$0x1]
        %s961 = scalar_lea.vmem %s257, 92
        %v962 = vld [vmem:[%s961] sm:$0xf]
        %v965 = vunpack.c.l.b16 %v959
        %v966 = vunpack.c.l.b16 %v960
        %v967 = vpack.c.b16 %v966, %v965
        %v969 = vshrl.u32 %v967, 16
        %v971 = vshll.u32 %v967, 16
        %v973 = vrot.slane %v971, 1
        %v974 = vor.u32 %v969, %v973
        %v976 = vsel %vm277, %v974, 0
        %v979 = vsel %vm281, %v962, 0
        %981 = vmatpush.bf16.msra.mxu0 0
        %982 = vmatpush.bf16.msra.mxu0 0
        %983 = vmatpush.bf16.msra.mxu0 0
        %984 = vmatpush.bf16.msra.mxu0 0
        %985 = vmatpush.bf16.msra.mxu0 0
        %986 = vmatpush.bf16.msra.mxu0 0
        %987 = vmatpush.bf16.msra.mxu0 0
        %988 = vmatpush.bf16.msra.mxu0 %v979
        %989 = vmatmul.bf16.gmra.mxu0 %v976
        %v990 = vpop.f32.mrf.mxu0
        %v991 = vadd.f32 0.0, %v990
        %v992 = vpop.f32.mrf.mxu0
        %993 = vdwg.mxu0
        %v994 = vadd.f32 %v958, %v991
        %v995 = vld [vmem:[%s935] sm:$0xf]
        %v996 = vld [vmem:[%s935 + $0x4] sm:$0x1]
        %s997 = scalar_lea.vmem %s257, 96
        %v998 = vld [vmem:[%s997] sm:$0xf]
        %v1001 = vunpack.c.l.b16 %v995
        %v1002 = vunpack.c.l.b16 %v996
        %v1003 = vpack.c.b16 %v1002, %v1001
        %v1005 = vshrl.u32 %v1003, 16
        %v1007 = vshll.u32 %v1003, 16
        %v1009 = vrot.slane %v1007, 1
        %v1010 = vor.u32 %v1005, %v1009
        %v1012 = vsel %vm277, %v1010, 0
        %v1015 = vsel %vm281, %v998, 0
        %1017 = vmatpush.bf16.msra.mxu0 0
        %1018 = vmatpush.bf16.msra.mxu0 0
        %1019 = vmatpush.bf16.msra.mxu0 0
        %1020 = vmatpush.bf16.msra.mxu0 0
        %1021 = vmatpush.bf16.msra.mxu0 0
        %1022 = vmatpush.bf16.msra.mxu0 0
        %1023 = vmatpush.bf16.msra.mxu0 0
        %1024 = vmatpush.bf16.msra.mxu0 %v1015
        %1025 = vmatmul.bf16.gmra.mxu0 %v1012
        %v1026 = vpop.f32.mrf.mxu0
        %v1027 = vadd.f32 0.0, %v1026
        %v1028 = vpop.f32.mrf.mxu0
        %1029 = vdwg.mxu0
        %v1030 = vadd.f32 %v994, %v1027
        %v1031 = vld [vmem:[%s908] sm:$0xe]
        %s1032 = scalar_lea.vmem %s257, 100
        %v1033 = vld [vmem:[%s1032] sm:$0xf]
        %v1035 = vunpack.c.l.b16 %v1031
        %v1036 = vpack.c.b16 %v966, %v1035
        %v1037 = vrot.slane %v1036, 1
        %v1039 = vsel %vm277, %v1037, 0
        %v1042 = vsel %vm281, %v1033, 0
        %1044 = vmatpush.bf16.msra.mxu0 0
        %1045 = vmatpush.bf16.msra.mxu0 0
        %1046 = vmatpush.bf16.msra.mxu0 0
        %1047 = vmatpush.bf16.msra.mxu0 0
        %1048 = vmatpush.bf16.msra.mxu0 0
        %1049 = vmatpush.bf16.msra.mxu0 0
        %1050 = vmatpush.bf16.msra.mxu0 0
        %1051 = vmatpush.bf16.msra.mxu0 %v1042
        %1052 = vmatmul.bf16.gmra.mxu0 %v1039
        %v1053 = vpop.f32.mrf.mxu0
        %v1054 = vadd.f32 0.0, %v1053
        %v1055 = vpop.f32.mrf.mxu0
        %1056 = vdwg.mxu0
        %v1057 = vadd.f32 %v1030, %v1054
        %v1058 = vld [vmem:[%s935] sm:$0xe]
        %s1059 = scalar_lea.vmem %s257, 104
        %v1060 = vld [vmem:[%s1059] sm:$0xf]
        %v1062 = vunpack.c.l.b16 %v1058
        %v1063 = vpack.c.b16 %v1002, %v1062
        %v1064 = vrot.slane %v1063, 1
        %v1066 = vsel %vm277, %v1064, 0
        %v1069 = vsel %vm281, %v1060, 0
        %1071 = vmatpush.bf16.msra.mxu0 0
        %1072 = vmatpush.bf16.msra.mxu0 0
        %1073 = vmatpush.bf16.msra.mxu0 0
        %1074 = vmatpush.bf16.msra.mxu0 0
        %1075 = vmatpush.bf16.msra.mxu0 0
        %1076 = vmatpush.bf16.msra.mxu0 0
        %1077 = vmatpush.bf16.msra.mxu0 0
        %1078 = vmatpush.bf16.msra.mxu0 %v1069
        %1079 = vmatmul.bf16.gmra.mxu0 %v1066
        %v1080 = vpop.f32.mrf.mxu0
        %v1081 = vadd.f32 0.0, %v1080
        %v1082 = vpop.f32.mrf.mxu0
        %1083 = vdwg.mxu0
        %v1084 = vadd.f32 %v1057, %v1081
        %v1085 = vld [vmem:[%s908 + $0x4] sm:$0x3]
        %s1086 = scalar_lea.vmem %s257, 108
        %v1087 = vld [vmem:[%s1086] sm:$0xf]
        %v1089 = vunpack.c.l.b16 %v1085
        %v1090 = vpack.c.b16 %v1089, %v1035
        %v1092 = vshrl.u32 %v1090, 16
        %v1094 = vrot.slane %v1092, 1
        %v1095 = vshll.u32 %v1090, 16
        %v1097 = vrot.slane %v1095, 2
        %v1098 = vor.u32 %v1094, %v1097
        %v1100 = vsel %vm277, %v1098, 0
        %v1103 = vsel %vm281, %v1087, 0
        %1105 = vmatpush.bf16.msra.mxu0 0
        %1106 = vmatpush.bf16.msra.mxu0 0
        %1107 = vmatpush.bf16.msra.mxu0 0
        %1108 = vmatpush.bf16.msra.mxu0 0
        %1109 = vmatpush.bf16.msra.mxu0 0
        %1110 = vmatpush.bf16.msra.mxu0 0
        %1111 = vmatpush.bf16.msra.mxu0 0
        %1112 = vmatpush.bf16.msra.mxu0 %v1103
        %1113 = vmatmul.bf16.gmra.mxu0 %v1100
        %v1114 = vpop.f32.mrf.mxu0
        %v1115 = vadd.f32 0.0, %v1114
        %v1116 = vpop.f32.mrf.mxu0
        %1117 = vdwg.mxu0
        %v1118 = vadd.f32 %v1084, %v1115
        %s1119 = sadd.s32 %s25, 2
        %s1120 = smul.u32 %s1119, 2
        %s1121 = smul.addr %s1120, 4
        %s1122 = scalar_lea.vmem %s253, %s1121
        %v1123 = vld [vmem:[%s1122] sm:$0xf]
        %s1124 = scalar_lea.vmem %s257, 112
        %v1125 = vld [vmem:[%s1124] sm:$0xf]
        %v1127 = vsel %vm277, %v1123, 0
        %v1130 = vsel %vm281, %v1125, 0
        %1132 = vmatpush.bf16.msra.mxu0 0
        %1133 = vmatpush.bf16.msra.mxu0 0
        %1134 = vmatpush.bf16.msra.mxu0 0
        %1135 = vmatpush.bf16.msra.mxu0 0
        %1136 = vmatpush.bf16.msra.mxu0 0
        %1137 = vmatpush.bf16.msra.mxu0 0
        %1138 = vmatpush.bf16.msra.mxu0 0
        %1139 = vmatpush.bf16.msra.mxu0 %v1130
        %1140 = vmatmul.bf16.gmra.mxu0 %v1127
        %v1141 = vpop.f32.mrf.mxu0
        %v1142 = vadd.f32 0.0, %v1141
        %v1143 = vpop.f32.mrf.mxu0
        %1144 = vdwg.mxu0
        %v1145 = vadd.f32 %v1118, %v1142
        %s1146 = sadd.s32 %s25, 13
        %s1147 = smul.u32 %s1146, 2
        %s1148 = smul.addr %s1147, 4
        %s1149 = scalar_lea.vmem %s253, %s1148
        %v1150 = vld [vmem:[%s1149] sm:$0xf]
        %s1151 = scalar_lea.vmem %s257, 116
        %v1152 = vld [vmem:[%s1151] sm:$0xf]
        %v1154 = vsel %vm277, %v1150, 0
        %v1157 = vsel %vm281, %v1152, 0
        %1159 = vmatpush.bf16.msra.mxu0 0
        %1160 = vmatpush.bf16.msra.mxu0 0
        %1161 = vmatpush.bf16.msra.mxu0 0
        %1162 = vmatpush.bf16.msra.mxu0 0
        %1163 = vmatpush.bf16.msra.mxu0 0
        %1164 = vmatpush.bf16.msra.mxu0 0
        %1165 = vmatpush.bf16.msra.mxu0 0
        %1166 = vmatpush.bf16.msra.mxu0 %v1157
        %1167 = vmatmul.bf16.gmra.mxu0 %v1154
        %v1168 = vpop.f32.mrf.mxu0
        %v1169 = vadd.f32 0.0, %v1168
        %v1170 = vpop.f32.mrf.mxu0
        %1171 = vdwg.mxu0
        %v1172 = vadd.f32 %v1145, %v1169
        %v1173 = vld [vmem:[%s1122] sm:$0xf]
        %v1174 = vld [vmem:[%s1122 + $0x4] sm:$0x1]
        %s1175 = scalar_lea.vmem %s257, 120
        %v1176 = vld [vmem:[%s1175] sm:$0xf]
        %v1179 = vunpack.c.l.b16 %v1173
        %v1180 = vunpack.c.l.b16 %v1174
        %v1181 = vpack.c.b16 %v1180, %v1179
        %v1183 = vshrl.u32 %v1181, 16
        %v1185 = vshll.u32 %v1181, 16
        %v1187 = vrot.slane %v1185, 1
        %v1188 = vor.u32 %v1183, %v1187
        %v1190 = vsel %vm277, %v1188, 0
        %v1193 = vsel %vm281, %v1176, 0
        %1195 = vmatpush.bf16.msra.mxu0 0
        %1196 = vmatpush.bf16.msra.mxu0 0
        %1197 = vmatpush.bf16.msra.mxu0 0
        %1198 = vmatpush.bf16.msra.mxu0 0
        %1199 = vmatpush.bf16.msra.mxu0 0
        %1200 = vmatpush.bf16.msra.mxu0 0
        %1201 = vmatpush.bf16.msra.mxu0 0
        %1202 = vmatpush.bf16.msra.mxu0 %v1193
        %1203 = vmatmul.bf16.gmra.mxu0 %v1190
        %v1204 = vpop.f32.mrf.mxu0
        %v1205 = vadd.f32 0.0, %v1204
        %v1206 = vpop.f32.mrf.mxu0
        %1207 = vdwg.mxu0
        %v1208 = vadd.f32 %v1172, %v1205
        %v1209 = vld [vmem:[%s1149] sm:$0xf]
        %v1210 = vld [vmem:[%s1149 + $0x4] sm:$0x1]
        %s1211 = scalar_lea.vmem %s257, 124
        %v1212 = vld [vmem:[%s1211] sm:$0xf]
        %v1215 = vunpack.c.l.b16 %v1209
        %v1216 = vunpack.c.l.b16 %v1210
        %v1217 = vpack.c.b16 %v1216, %v1215
        %v1219 = vshrl.u32 %v1217, 16
        %v1221 = vshll.u32 %v1217, 16
        %v1223 = vrot.slane %v1221, 1
        %v1224 = vor.u32 %v1219, %v1223
        %v1226 = vsel %vm277, %v1224, 0
        %v1229 = vsel %vm281, %v1212, 0
        %1231 = vmatpush.bf16.msra.mxu0 0
        %1232 = vmatpush.bf16.msra.mxu0 0
        %1233 = vmatpush.bf16.msra.mxu0 0
        %1234 = vmatpush.bf16.msra.mxu0 0
        %1235 = vmatpush.bf16.msra.mxu0 0
        %1236 = vmatpush.bf16.msra.mxu0 0
        %1237 = vmatpush.bf16.msra.mxu0 0
        %1238 = vmatpush.bf16.msra.mxu0 %v1229
        %1239 = vmatmul.bf16.gmra.mxu0 %v1226
        %v1240 = vpop.f32.mrf.mxu0
        %v1241 = vadd.f32 0.0, %v1240
        %v1242 = vpop.f32.mrf.mxu0
        %1243 = vdwg.mxu0
        %v1244 = vadd.f32 %v1208, %v1241
        %v1245 = vld [vmem:[%s1122] sm:$0xe]
        %s1246 = scalar_lea.vmem %s257, 128
        %v1247 = vld [vmem:[%s1246] sm:$0xf]
        %v1249 = vunpack.c.l.b16 %v1245
        %v1250 = vpack.c.b16 %v1180, %v1249
        %v1251 = vrot.slane %v1250, 1
        %v1253 = vsel %vm277, %v1251, 0
        %v1256 = vsel %vm281, %v1247, 0
        %1258 = vmatpush.bf16.msra.mxu0 0
        %1259 = vmatpush.bf16.msra.mxu0 0
        %1260 = vmatpush.bf16.msra.mxu0 0
        %1261 = vmatpush.bf16.msra.mxu0 0
        %1262 = vmatpush.bf16.msra.mxu0 0
        %1263 = vmatpush.bf16.msra.mxu0 0
        %1264 = vmatpush.bf16.msra.mxu0 0
        %1265 = vmatpush.bf16.msra.mxu0 %v1256
        %1266 = vmatmul.bf16.gmra.mxu0 %v1253
        %v1267 = vpop.f32.mrf.mxu0
        %v1268 = vadd.f32 0.0, %v1267
        %v1269 = vpop.f32.mrf.mxu0
        %1270 = vdwg.mxu0
        %v1271 = vadd.f32 %v1244, %v1268
        %v1272 = vld [vmem:[%s1149] sm:$0xe]
        %s1273 = scalar_lea.vmem %s257, 132
        %v1274 = vld [vmem:[%s1273] sm:$0xf]
        %v1276 = vunpack.c.l.b16 %v1272
        %v1277 = vpack.c.b16 %v1216, %v1276
        %v1278 = vrot.slane %v1277, 1
        %v1280 = vsel %vm277, %v1278, 0
        %v1283 = vsel %vm281, %v1274, 0
        %1285 = vmatpush.bf16.msra.mxu0 0
        %1286 = vmatpush.bf16.msra.mxu0 0
        %1287 = vmatpush.bf16.msra.mxu0 0
        %1288 = vmatpush.bf16.msra.mxu0 0
        %1289 = vmatpush.bf16.msra.mxu0 0
        %1290 = vmatpush.bf16.msra.mxu0 0
        %1291 = vmatpush.bf16.msra.mxu0 0
        %1292 = vmatpush.bf16.msra.mxu0 %v1283
        %1293 = vmatmul.bf16.gmra.mxu0 %v1280
        %v1294 = vpop.f32.mrf.mxu0
        %v1295 = vadd.f32 0.0, %v1294
        %v1296 = vpop.f32.mrf.mxu0
        %1297 = vdwg.mxu0
        %v1298 = vadd.f32 %v1271, %v1295
        %v1299 = vld [vmem:[%s1122 + $0x4] sm:$0x3]
        %s1300 = scalar_lea.vmem %s257, 136
        %v1301 = vld [vmem:[%s1300] sm:$0xf]
        %v1303 = vunpack.c.l.b16 %v1299
        %v1304 = vpack.c.b16 %v1303, %v1249
        %v1306 = vshrl.u32 %v1304, 16
        %v1308 = vrot.slane %v1306, 1
        %v1309 = vshll.u32 %v1304, 16
        %v1311 = vrot.slane %v1309, 2
        %v1312 = vor.u32 %v1308, %v1311
        %v1314 = vsel %vm277, %v1312, 0
        %v1317 = vsel %vm281, %v1301, 0
        %1319 = vmatpush.bf16.msra.mxu0 0
        %1320 = vmatpush.bf16.msra.mxu0 0
        %1321 = vmatpush.bf16.msra.mxu0 0
        %1322 = vmatpush.bf16.msra.mxu0 0
        %1323 = vmatpush.bf16.msra.mxu0 0
        %1324 = vmatpush.bf16.msra.mxu0 0
        %1325 = vmatpush.bf16.msra.mxu0 0
        %1326 = vmatpush.bf16.msra.mxu0 %v1317
        %1327 = vmatmul.bf16.gmra.mxu0 %v1314
        %v1328 = vpop.f32.mrf.mxu0
        %v1329 = vadd.f32 0.0, %v1328
        %v1330 = vpop.f32.mrf.mxu0
        %1331 = vdwg.mxu0
        %v1332 = vadd.f32 %v1298, %v1329
        %s1333 = sadd.s32 %s25, 24
        %s1334 = smul.u32 %s1333, 2
        %s1335 = smul.addr %s1334, 4
        %s1336 = scalar_lea.vmem %s253, %s1335
        %v1337 = vld [vmem:[%s1336] sm:$0xf]
        %s1338 = scalar_lea.vmem %s257, 140
        %v1339 = vld [vmem:[%s1338] sm:$0xf]
        %v1341 = vsel %vm277, %v1337, 0
        %v1344 = vsel %vm281, %v1339, 0
        %1346 = vmatpush.bf16.msra.mxu0 0
        %1347 = vmatpush.bf16.msra.mxu0 0
        %1348 = vmatpush.bf16.msra.mxu0 0
        %1349 = vmatpush.bf16.msra.mxu0 0
        %1350 = vmatpush.bf16.msra.mxu0 0
        %1351 = vmatpush.bf16.msra.mxu0 0
        %1352 = vmatpush.bf16.msra.mxu0 0
        %1353 = vmatpush.bf16.msra.mxu0 %v1344
        %1354 = vmatmul.bf16.gmra.mxu0 %v1341
        %v1355 = vpop.f32.mrf.mxu0
        %v1356 = vadd.f32 0.0, %v1355
        %v1357 = vpop.f32.mrf.mxu0
        %1358 = vdwg.mxu0
        %v1359 = vadd.f32 %v1332, %v1356
        %s1360 = sadd.s32 %s25, 35
        %s1361 = smul.u32 %s1360, 2
        %s1362 = smul.addr %s1361, 4
        %s1363 = scalar_lea.vmem %s253, %s1362
        %v1364 = vld [vmem:[%s1363] sm:$0xf]
        %s1365 = scalar_lea.vmem %s257, 144
        %v1366 = vld [vmem:[%s1365] sm:$0xf]
        %v1368 = vsel %vm277, %v1364, 0
        %v1371 = vsel %vm281, %v1366, 0
        %1373 = vmatpush.bf16.msra.mxu0 0
        %1374 = vmatpush.bf16.msra.mxu0 0
        %1375 = vmatpush.bf16.msra.mxu0 0
        %1376 = vmatpush.bf16.msra.mxu0 0
        %1377 = vmatpush.bf16.msra.mxu0 0
        %1378 = vmatpush.bf16.msra.mxu0 0
        %1379 = vmatpush.bf16.msra.mxu0 0
        %1380 = vmatpush.bf16.msra.mxu0 %v1371
        %1381 = vmatmul.bf16.gmra.mxu0 %v1368
        %v1382 = vpop.f32.mrf.mxu0
        %v1383 = vadd.f32 0.0, %v1382
        %v1384 = vpop.f32.mrf.mxu0
        %1385 = vdwg.mxu0
        %v1386 = vadd.f32 %v1359, %v1383
        %v1387 = vld [vmem:[%s1336] sm:$0xf]
        %v1388 = vld [vmem:[%s1336 + $0x4] sm:$0x1]
        %s1389 = scalar_lea.vmem %s257, 148
        %v1390 = vld [vmem:[%s1389] sm:$0xf]
        %v1393 = vunpack.c.l.b16 %v1387
        %v1394 = vunpack.c.l.b16 %v1388
        %v1395 = vpack.c.b16 %v1394, %v1393
        %v1397 = vshrl.u32 %v1395, 16
        %v1399 = vshll.u32 %v1395, 16
        %v1401 = vrot.slane %v1399, 1
        %v1402 = vor.u32 %v1397, %v1401
        %v1404 = vsel %vm277, %v1402, 0
        %v1407 = vsel %vm281, %v1390, 0
        %1409 = vmatpush.bf16.msra.mxu0 0
        %1410 = vmatpush.bf16.msra.mxu0 0
        %1411 = vmatpush.bf16.msra.mxu0 0
        %1412 = vmatpush.bf16.msra.mxu0 0
        %1413 = vmatpush.bf16.msra.mxu0 0
        %1414 = vmatpush.bf16.msra.mxu0 0
        %1415 = vmatpush.bf16.msra.mxu0 0
        %1416 = vmatpush.bf16.msra.mxu0 %v1407
        %1417 = vmatmul.bf16.gmra.mxu0 %v1404
        %v1418 = vpop.f32.mrf.mxu0
        %v1419 = vadd.f32 0.0, %v1418
        %v1420 = vpop.f32.mrf.mxu0
        %1421 = vdwg.mxu0
        %v1422 = vadd.f32 %v1386, %v1419
        %v1423 = vld [vmem:[%s1363] sm:$0xf]
        %v1424 = vld [vmem:[%s1363 + $0x4] sm:$0x1]
        %s1425 = scalar_lea.vmem %s257, 152
        %v1426 = vld [vmem:[%s1425] sm:$0xf]
        %v1429 = vunpack.c.l.b16 %v1423
        %v1430 = vunpack.c.l.b16 %v1424
        %v1431 = vpack.c.b16 %v1430, %v1429
        %v1433 = vshrl.u32 %v1431, 16
        %v1435 = vshll.u32 %v1431, 16
        %v1437 = vrot.slane %v1435, 1
        %v1438 = vor.u32 %v1433, %v1437
        %v1440 = vsel %vm277, %v1438, 0
        %v1443 = vsel %vm281, %v1426, 0
        %1445 = vmatpush.bf16.msra.mxu0 0
        %1446 = vmatpush.bf16.msra.mxu0 0
        %1447 = vmatpush.bf16.msra.mxu0 0
        %1448 = vmatpush.bf16.msra.mxu0 0
        %1449 = vmatpush.bf16.msra.mxu0 0
        %1450 = vmatpush.bf16.msra.mxu0 0
        %1451 = vmatpush.bf16.msra.mxu0 0
        %1452 = vmatpush.bf16.msra.mxu0 %v1443
        %1453 = vmatmul.bf16.gmra.mxu0 %v1440
        %v1454 = vpop.f32.mrf.mxu0
        %v1455 = vadd.f32 0.0, %v1454
        %v1456 = vpop.f32.mrf.mxu0
        %1457 = vdwg.mxu0
        %v1458 = vadd.f32 %v1422, %v1455
        %v1459 = vld [vmem:[%s1336] sm:$0xe]
        %s1460 = scalar_lea.vmem %s257, 156
        %v1461 = vld [vmem:[%s1460] sm:$0xf]
        %v1463 = vunpack.c.l.b16 %v1459
        %v1464 = vpack.c.b16 %v1394, %v1463
        %v1465 = vrot.slane %v1464, 1
        %v1467 = vsel %vm277, %v1465, 0
        %v1470 = vsel %vm281, %v1461, 0
        %1472 = vmatpush.bf16.msra.mxu0 0
        %1473 = vmatpush.bf16.msra.mxu0 0
        %1474 = vmatpush.bf16.msra.mxu0 0
        %1475 = vmatpush.bf16.msra.mxu0 0
        %1476 = vmatpush.bf16.msra.mxu0 0
        %1477 = vmatpush.bf16.msra.mxu0 0
        %1478 = vmatpush.bf16.msra.mxu0 0
        %1479 = vmatpush.bf16.msra.mxu0 %v1470
        %1480 = vmatmul.bf16.gmra.mxu0 %v1467
        %v1481 = vpop.f32.mrf.mxu0
        %v1482 = vadd.f32 0.0, %v1481
        %v1483 = vpop.f32.mrf.mxu0
        %1484 = vdwg.mxu0
        %v1485 = vadd.f32 %v1458, %v1482
        %v1486 = vld [vmem:[%s1363] sm:$0xe]
        %s1487 = scalar_lea.vmem %s257, 160
        %v1488 = vld [vmem:[%s1487] sm:$0xf]
        %v1490 = vunpack.c.l.b16 %v1486
        %v1491 = vpack.c.b16 %v1430, %v1490
        %v1492 = vrot.slane %v1491, 1
        %v1494 = vsel %vm277, %v1492, 0
        %v1497 = vsel %vm281, %v1488, 0
        %1499 = vmatpush.bf16.msra.mxu0 0
        %1500 = vmatpush.bf16.msra.mxu0 0
        %1501 = vmatpush.bf16.msra.mxu0 0
        %1502 = vmatpush.bf16.msra.mxu0 0
        %1503 = vmatpush.bf16.msra.mxu0 0
        %1504 = vmatpush.bf16.msra.mxu0 0
        %1505 = vmatpush.bf16.msra.mxu0 0
        %1506 = vmatpush.bf16.msra.mxu0 %v1497
        %1507 = vmatmul.bf16.gmra.mxu0 %v1494
        %v1508 = vpop.f32.mrf.mxu0
        %v1509 = vadd.f32 0.0, %v1508
        %v1510 = vpop.f32.mrf.mxu0
        %1511 = vdwg.mxu0
        %v1512 = vadd.f32 %v1485, %v1509
        %v1513 = vld [vmem:[%s1336 + $0x4] sm:$0x3]
        %s1514 = scalar_lea.vmem %s257, 164
        %v1515 = vld [vmem:[%s1514] sm:$0xf]
        %v1517 = vunpack.c.l.b16 %v1513
        %v1518 = vpack.c.b16 %v1517, %v1463
        %v1520 = vshrl.u32 %v1518, 16
        %v1522 = vrot.slane %v1520, 1
        %v1523 = vshll.u32 %v1518, 16
        %v1525 = vrot.slane %v1523, 2
        %v1526 = vor.u32 %v1522, %v1525
        %v1528 = vsel %vm277, %v1526, 0
        %v1531 = vsel %vm281, %v1515, 0
        %1533 = vmatpush.bf16.msra.mxu0 0
        %1534 = vmatpush.bf16.msra.mxu0 0
        %1535 = vmatpush.bf16.msra.mxu0 0
        %1536 = vmatpush.bf16.msra.mxu0 0
        %1537 = vmatpush.bf16.msra.mxu0 0
        %1538 = vmatpush.bf16.msra.mxu0 0
        %1539 = vmatpush.bf16.msra.mxu0 0
        %1540 = vmatpush.bf16.msra.mxu0 %v1531
        %1541 = vmatmul.bf16.gmra.mxu0 %v1528
        %v1542 = vpop.f32.mrf.mxu0
        %v1543 = vadd.f32 0.0, %v1542
        %v1544 = vpop.f32.mrf.mxu0
        %1545 = vdwg.mxu0
        %v1546 = vadd.f32 %v1512, %v1543
        %s1547 = sadd.s32 %s25, 3
        %s1548 = smul.u32 %s1547, 2
        %s1549 = smul.addr %s1548, 4
        %s1550 = scalar_lea.vmem %s253, %s1549
        %v1551 = vld [vmem:[%s1550] sm:$0xf]
        %s1552 = scalar_lea.vmem %s257, 168
        %v1553 = vld [vmem:[%s1552] sm:$0xf]
        %v1555 = vsel %vm277, %v1551, 0
        %v1558 = vsel %vm281, %v1553, 0
        %1560 = vmatpush.bf16.msra.mxu0 0
        %1561 = vmatpush.bf16.msra.mxu0 0
        %1562 = vmatpush.bf16.msra.mxu0 0
        %1563 = vmatpush.bf16.msra.mxu0 0
        %1564 = vmatpush.bf16.msra.mxu0 0
        %1565 = vmatpush.bf16.msra.mxu0 0
        %1566 = vmatpush.bf16.msra.mxu0 0
        %1567 = vmatpush.bf16.msra.mxu0 %v1558
        %1568 = vmatmul.bf16.gmra.mxu0 %v1555
        %v1569 = vpop.f32.mrf.mxu0
        %v1570 = vadd.f32 0.0, %v1569
        %v1571 = vpop.f32.mrf.mxu0
        %1572 = vdwg.mxu0
        %v1573 = vadd.f32 %v1546, %v1570
        %s1574 = sadd.s32 %s25, 14
        %s1575 = smul.u32 %s1574, 2
        %s1576 = smul.addr %s1575, 4
        %s1577 = scalar_lea.vmem %s253, %s1576
        %v1578 = vld [vmem:[%s1577] sm:$0xf]
        %s1579 = scalar_lea.vmem %s257, 172
        %v1580 = vld [vmem:[%s1579] sm:$0xf]
        %v1582 = vsel %vm277, %v1578, 0
        %v1585 = vsel %vm281, %v1580, 0
        %1587 = vmatpush.bf16.msra.mxu0 0
        %1588 = vmatpush.bf16.msra.mxu0 0
        %1589 = vmatpush.bf16.msra.mxu0 0
        %1590 = vmatpush.bf16.msra.mxu0 0
        %1591 = vmatpush.bf16.msra.mxu0 0
        %1592 = vmatpush.bf16.msra.mxu0 0
        %1593 = vmatpush.bf16.msra.mxu0 0
        %1594 = vmatpush.bf16.msra.mxu0 %v1585
        %1595 = vmatmul.bf16.gmra.mxu0 %v1582
        %v1596 = vpop.f32.mrf.mxu0
        %v1597 = vadd.f32 0.0, %v1596
        %v1598 = vpop.f32.mrf.mxu0
        %1599 = vdwg.mxu0
        %v1600 = vadd.f32 %v1573, %v1597
        %v1601 = vld [vmem:[%s1550] sm:$0xf]
        %v1602 = vld [vmem:[%s1550 + $0x4] sm:$0x1]
        %s1603 = scalar_lea.vmem %s257, 176
        %v1604 = vld [vmem:[%s1603] sm:$0xf]
        %v1607 = vunpack.c.l.b16 %v1601
        %v1608 = vunpack.c.l.b16 %v1602
        %v1609 = vpack.c.b16 %v1608, %v1607
        %v1611 = vshrl.u32 %v1609, 16
        %v1613 = vshll.u32 %v1609, 16
        %v1615 = vrot.slane %v1613, 1
        %v1616 = vor.u32 %v1611, %v1615
        %v1618 = vsel %vm277, %v1616, 0
        %v1621 = vsel %vm281, %v1604, 0
        %1623 = vmatpush.bf16.msra.mxu0 0
        %1624 = vmatpush.bf16.msra.mxu0 0
        %1625 = vmatpush.bf16.msra.mxu0 0
        %1626 = vmatpush.bf16.msra.mxu0 0
        %1627 = vmatpush.bf16.msra.mxu0 0
        %1628 = vmatpush.bf16.msra.mxu0 0
        %1629 = vmatpush.bf16.msra.mxu0 0
        %1630 = vmatpush.bf16.msra.mxu0 %v1621
        %1631 = vmatmul.bf16.gmra.mxu0 %v1618
        %v1632 = vpop.f32.mrf.mxu0
        %v1633 = vadd.f32 0.0, %v1632
        %v1634 = vpop.f32.mrf.mxu0
        %1635 = vdwg.mxu0
        %v1636 = vadd.f32 %v1600, %v1633
        %v1637 = vld [vmem:[%s1577] sm:$0xf]
        %v1638 = vld [vmem:[%s1577 + $0x4] sm:$0x1]
        %s1639 = scalar_lea.vmem %s257, 180
        %v1640 = vld [vmem:[%s1639] sm:$0xf]
        %v1643 = vunpack.c.l.b16 %v1637
        %v1644 = vunpack.c.l.b16 %v1638
        %v1645 = vpack.c.b16 %v1644, %v1643
        %v1647 = vshrl.u32 %v1645, 16
        %v1649 = vshll.u32 %v1645, 16
        %v1651 = vrot.slane %v1649, 1
        %v1652 = vor.u32 %v1647, %v1651
        %v1654 = vsel %vm277, %v1652, 0
        %v1657 = vsel %vm281, %v1640, 0
        %1659 = vmatpush.bf16.msra.mxu0 0
        %1660 = vmatpush.bf16.msra.mxu0 0
        %1661 = vmatpush.bf16.msra.mxu0 0
        %1662 = vmatpush.bf16.msra.mxu0 0
        %1663 = vmatpush.bf16.msra.mxu0 0
        %1664 = vmatpush.bf16.msra.mxu0 0
        %1665 = vmatpush.bf16.msra.mxu0 0
        %1666 = vmatpush.bf16.msra.mxu0 %v1657
        %1667 = vmatmul.bf16.gmra.mxu0 %v1654
        %v1668 = vpop.f32.mrf.mxu0
        %v1669 = vadd.f32 0.0, %v1668
        %v1670 = vpop.f32.mrf.mxu0
        %1671 = vdwg.mxu0
        %v1672 = vadd.f32 %v1636, %v1669
        %v1673 = vld [vmem:[%s1550] sm:$0xe]
        %s1674 = scalar_lea.vmem %s257, 184
        %v1675 = vld [vmem:[%s1674] sm:$0xf]
        %v1677 = vunpack.c.l.b16 %v1673
        %v1678 = vpack.c.b16 %v1608, %v1677
        %v1679 = vrot.slane %v1678, 1
        %v1681 = vsel %vm277, %v1679, 0
        %v1684 = vsel %vm281, %v1675, 0
        %1686 = vmatpush.bf16.msra.mxu0 0
        %1687 = vmatpush.bf16.msra.mxu0 0
        %1688 = vmatpush.bf16.msra.mxu0 0
        %1689 = vmatpush.bf16.msra.mxu0 0
        %1690 = vmatpush.bf16.msra.mxu0 0
        %1691 = vmatpush.bf16.msra.mxu0 0
        %1692 = vmatpush.bf16.msra.mxu0 0
        %1693 = vmatpush.bf16.msra.mxu0 %v1684
        %1694 = vmatmul.bf16.gmra.mxu0 %v1681
        %v1695 = vpop.f32.mrf.mxu0
        %v1696 = vadd.f32 0.0, %v1695
        %v1697 = vpop.f32.mrf.mxu0
        %1698 = vdwg.mxu0
        %v1699 = vadd.f32 %v1672, %v1696
        %v1700 = vld [vmem:[%s1577] sm:$0xe]
        %s1701 = scalar_lea.vmem %s257, 188
        %v1702 = vld [vmem:[%s1701] sm:$0xf]
        %v1704 = vunpack.c.l.b16 %v1700
        %v1705 = vpack.c.b16 %v1644, %v1704
        %v1706 = vrot.slane %v1705, 1
        %v1708 = vsel %vm277, %v1706, 0
        %v1711 = vsel %vm281, %v1702, 0
        %1713 = vmatpush.bf16.msra.mxu0 0
        %1714 = vmatpush.bf16.msra.mxu0 0
        %1715 = vmatpush.bf16.msra.mxu0 0
        %1716 = vmatpush.bf16.msra.mxu0 0
        %1717 = vmatpush.bf16.msra.mxu0 0
        %1718 = vmatpush.bf16.msra.mxu0 0
        %1719 = vmatpush.bf16.msra.mxu0 0
        %1720 = vmatpush.bf16.msra.mxu0 %v1711
        %1721 = vmatmul.bf16.gmra.mxu0 %v1708
        %v1722 = vpop.f32.mrf.mxu0
        %v1723 = vadd.f32 0.0, %v1722
        %v1724 = vpop.f32.mrf.mxu0
        %1725 = vdwg.mxu0
        %v1726 = vadd.f32 %v1699, %v1723
        %v1727 = vld [vmem:[%s1550 + $0x4] sm:$0x3]
        %s1728 = scalar_lea.vmem %s257, 192
        %v1729 = vld [vmem:[%s1728] sm:$0xf]
        %v1731 = vunpack.c.l.b16 %v1727
        %v1732 = vpack.c.b16 %v1731, %v1677
        %v1734 = vshrl.u32 %v1732, 16
        %v1736 = vrot.slane %v1734, 1
        %v1737 = vshll.u32 %v1732, 16
        %v1739 = vrot.slane %v1737, 2
        %v1740 = vor.u32 %v1736, %v1739
        %v1742 = vsel %vm277, %v1740, 0
        %v1745 = vsel %vm281, %v1729, 0
        %1747 = vmatpush.bf16.msra.mxu0 0
        %1748 = vmatpush.bf16.msra.mxu0 0
        %1749 = vmatpush.bf16.msra.mxu0 0
        %1750 = vmatpush.bf16.msra.mxu0 0
        %1751 = vmatpush.bf16.msra.mxu0 0
        %1752 = vmatpush.bf16.msra.mxu0 0
        %1753 = vmatpush.bf16.msra.mxu0 0
        %1754 = vmatpush.bf16.msra.mxu0 %v1745
        %1755 = vmatmul.bf16.gmra.mxu0 %v1742
        %v1756 = vpop.f32.mrf.mxu0
        %v1757 = vadd.f32 0.0, %v1756
        %v1758 = vpop.f32.mrf.mxu0
        %1759 = vdwg.mxu0
        %v1760 = vadd.f32 %v1726, %v1757
        %v1761 = vld [vmem:[%s260] sm:$0x1]
        %v1763 = vperm.slane %v1761, 0
        %v1765 = vmul.f32 %v1760, %v1763
        %v1766 = vld [vmem:[%s263] sm:$0x1]
        %v1768 = vperm.slane %v1766, 0
        %v1770 = vadd.f32 %v1765, %v1768
        %v1771 = vmax.f32 %v1770, 0.0
        %v1772 = vpack.c.bf16 %v1771, %v1771
        %vm1773 = vcmask 519168
        %1774 = vst.msk [vmem:[%s248] sm:$0xf] %vm1773, %v1772
        %s1775 = sand.u32 %s153, 1
        %s1776 = scalar_lea.sflag [#allocation3], %s1775
        %s1777 = sand.u32 %s153, 1
        %s1778 = smul.addr %s1777, 4
        %s1779 = scalar_lea.vmem [#allocation2], %s1778
        // Predicated region
        $region37: #{tpu_custom_call.1} parent=35 // pred_check
          %p1780 = pneg %p163
        $region38: #{tpu_custom_call.1} parent=35 // pred_check_branch
          %1782 = sbr.rel (%p1780) target = $region40
        $region39: #{tpu_custom_call.1} parent=35 // pred_region
          %1784 = vsyncadd %s1776, 0
          %s1785 = sadd.s32 %s24, %s25
          %s1786 = smul.addr %s23, 8
          %s1787 = sadd.s32 %s1785, %s1786
          %s1788 = smul.addr %s1787, 4
          %s1789 = scalar_lea.hbm %s4, %s1788
          %s1791 = sshll.u32 %s1779, 4
          %s1792 = int_to_ptr.vmem [resolvable:$true] %s1791
          %s1793 = sshll.u32 %s1789, 4
          %s1794 = int_to_ptr.hbm [resolvable:$true] %s1793
          %1796 = dma.vmem_to_hbm [thread:$0]  %s1792, 64, %s1794, %s1776
        $region40: #{tpu_custom_call.1} parent=35 // pred_fallthru
          _
      $region36: #{tpu_custom_call.1} parent=5 // pred_fallthru
        _
      %p1797 = scmp.le.s32.totalorder 2, %s13
      // Predicated region
      $region41: #{tpu_custom_call.1} parent=5 // pred_check
        %p1798 = pneg %p1797
      $region42: #{tpu_custom_call.1} parent=5 // pred_check_branch
        %1800 = sbr.rel (%p1798) target = $region44
      $region43: #{tpu_custom_call.1} parent=5 // pred_region
        %s1801 = ssub.s32 %s13, 2
        // Predicated region
        $region45: #{tpu_custom_call.1} parent=43 // pred_check
          %p1802 = pneg %p169
        $region46: #{tpu_custom_call.1} parent=43 // pred_check_branch
          %1804 = sbr.rel (%p1802) target = $region48
        $region47: #{tpu_custom_call.1} parent=43 // pred_region
          %s1805 = sand.u32 %s154, 1
          %s1806 = scalar_lea.sflag [#allocation3], %s1805
          %s1807 = sand.u32 %s154, 1
          %s1808 = smul.addr %s1807, 4
          %s1809 = scalar_lea.vmem [#allocation2], %s1808
          %1811 = dma.done %s1806, 64
        $region48: #{tpu_custom_call.1} parent=43 // pred_fallthru
          _
      $region44: #{tpu_custom_call.1} parent=5 // pred_fallthru
        _
    $region6: #{tpu_custom_call.1} parent=1 // loop_footer
      %s17 = sadd.s32 1, %s13
    $region7: #{tpu_custom_call.1} parent=1 // loop_footer_branch
      %12 = sbr.rel target = $region3
    $region8: #{tpu_custom_call.1} parent=1 // loop_exit
      _
    %1812 = vsyncpa [#allocation3], 1
    %s1813 = scalar_lea.sflag [#allocation3], 1
    %1814 = vsyncpa %s1813, 1

</llo_original>
